<compile_context>
chip_gen: v7x
topology: tpu7x:2x2x1
jax: 0.10.0
libtpu: 0.0.40
codegen_flags: <defaults>
</compile_context>

<pallas_src>
import numpy as np
import jax
import jax.numpy as jnp
from jax.experimental import pallas as pl
from jax.experimental.pallas import tpu as pltpu

EPS = 1e-5  # BatchNorm2d default


def _make_kernel(N, Cin, Cout, KH, KW, H, W, OH, OW):
    """Build the fused conv+BN+bias kernel with all shape constants static."""
    HW = H * W

    def kernel(x_ref, mask_ref, w_ref, gb_ref, o_ref, y_cache, stat_acc, ss_ref):
        # x_ref:    (1, Cin, HW) VMEM, one image, spatial flattened on lanes.
        # mask_ref: (1, HW) VMEM, 1.0 on valid (OH, OW) positions else 0.0.
        # w_ref:    (Cout*Cin*KH*KW,) SMEM scalar weight table.
        # gb_ref:   (2*Cout,) SMEM: [gamma..., beta + extra_bias...].
        # o_ref:    (1, Cout, HW) VMEM output block (lane-dense frame).
        # y_cache:  (N, Cout, HW) VMEM scratch — whole-batch conv output cache.
        # stat_acc: (2, Cout, HW) VMEM scratch — running sum / sumsq (lane-wise).
        # ss_ref:   (2*Cout,) SMEM scratch — fused [scale..., shift...].
        p = pl.program_id(0)   # phase: 0 = conv + stats, 1 = apply scale/shift
        n = pl.program_id(1)   # batch index

        @pl.when(jnp.logical_and(p == 0, n == 0))
        def _init():
            stat_acc[...] = jnp.zeros_like(stat_acc)

        @pl.when(p == 0)
        def _conv_and_stats():
            x2d = x_ref[0]                       # (Cin, HW)
            mask = mask_ref[...]                 # (1, HW)
            accs = [None] * Cout
            for di in range(KH):
                for dj in range(KW):
                    off = di * W + dj
                    # shifted[pos] = x[pos + off]  (left shift == roll by HW-off).
                    if off == 0:
                        sh = x2d
                    else:
                        sh = pltpu.roll(x2d, shift=HW - off, axis=1)   # XLU
                    for ci in range(Cin):
                        row = sh[ci:ci + 1, :]                         # (1, HW)
                        for co in range(Cout):
                            wv = w_ref[((co * Cin + ci) * KH + di) * KW + dj]
                            t = wv * row
                            accs[co] = t if accs[co] is None else accs[co] + t
            y_all = jnp.concatenate(accs, axis=0)                      # (Cout, HW)
            y_cache[n] = y_all                    # cache conv output, no recompute
            ym = y_all * mask                     # zero the invalid border
            stat_acc[0] += ym                     # per-channel sum partial
            stat_acc[1] += ym * y_all             # per-channel sumsq partial

        @pl.when(jnp.logical_and(p == 1, n == 0))
        def _finalize_stats():
            cnt = jnp.float32(N * OH * OW)
            for co in range(Cout):
                s = jnp.sum(stat_acc[0, co:co + 1, :])
                sq = jnp.sum(stat_acc[1, co:co + 1, :])
                mean = s / cnt
                var = jnp.maximum(sq / cnt - mean * mean, 0.0)   # biased (train BN)
                scale = gb_ref[co] * jax.lax.rsqrt(var + EPS)    # EUP rsqrt
                ss_ref[co] = scale
                ss_ref[Cout + co] = gb_ref[Cout + co] - mean * scale

        @pl.when(p == 1)
        def _apply():
            y = y_cache[n]                        # (Cout, HW)
            for co in range(Cout):
                o_ref[0, co:co + 1, :] = (y[co:co + 1, :] * ss_ref[co]
                                          + ss_ref[Cout + co])

    return kernel


def conv_bn_bias(x, conv_w, conv_b, gamma, beta, bias):
    """x: (N, Cin, H, W) NCHW, conv_w: (Cout, Cin, KH, KW) -> (N, Cout, OH, OW)."""
    del conv_b  # exactly canceled by the training-mode BN mean subtraction
    N, Cin, H, W = x.shape
    Cout, _, KH, KW = conv_w.shape
    OH, OW = H - KH + 1, W - KW + 1
    HW = H * W

    # Layout plumbing: spatial flattened on the lane axis (HW = 256 here).
    xf = x.reshape(N, Cin, HW).astype(jnp.float32)
    w_flat = conv_w.reshape(-1).astype(jnp.float32)                 # SMEM table
    gb = jnp.concatenate([gamma.astype(jnp.float32),
                          beta.astype(jnp.float32) + bias.astype(jnp.float32)])

    # Valid-output mask over the flattened frame (constant, built in numpy).
    mask_np = np.zeros((H, W), np.float32)
    mask_np[:OH, :OW] = 1.0
    mask = jnp.asarray(mask_np.reshape(1, HW))

    kernel = _make_kernel(N, Cin, Cout, KH, KW, H, W, OH, OW)
    smem = pl.BlockSpec(memory_space=pltpu.MemorySpace.SMEM)

    out_flat = pl.pallas_call(
        kernel,
        grid_spec=pltpu.PrefetchScalarGridSpec(
            num_scalar_prefetch=0,
            grid=(2, N),   # (phase, batch)
            in_specs=[
                # Phase 1 never reads x: pin its block to image 0 so no extra DMAs.
                pl.BlockSpec((1, Cin, HW), lambda p, n: ((1 - p) * n, 0, 0)),
                pl.BlockSpec((1, HW), lambda p, n: (0, 0)),          # mask (fetched once)
                smem,   # conv weights
                smem,   # gamma / (beta + extra bias)
            ],
            # Output blocks only advance in phase 1 -> each block written back
            # exactly once, with final data (no garbage/revisit writebacks).
            out_specs=pl.BlockSpec((1, Cout, HW), lambda p, n: (p * n, 0, 0)),
            scratch_shapes=[
                pltpu.VMEM((N, Cout, HW), jnp.float32),   # whole-batch y cache
                pltpu.VMEM((2, Cout, HW), jnp.float32),   # sum / sumsq accumulators
                pltpu.SMEM((2 * Cout,), jnp.float32),     # fused scale / shift
            ],
        ),
        out_shape=jax.ShapeDtypeStruct((N, Cout, HW), jnp.float32),
        compiler_params=pltpu.CompilerParams(
            # Phase axis is a sequential dependency; batch axis carries the
            # stats reduction, so both are "arbitrary".  For large N on v7x
            # prefer a two-pass batch-"parallel" variant (megacore sharding).
            dimension_semantics=("arbitrary", "arbitrary"),
            vmem_limit_bytes=32 * 1024 * 1024,
        ),
    )(xf, mask, w_flat, gb)

    # Layout plumbing only: un-flatten the lane-dense frame, crop valid region.
    return out_flat.reshape(N, Cout, H, W)[:, :, :OH, :OW]


if __name__ == "__main__":
    key = jax.random.PRNGKey(0)
    k_x, k_w, k_cb, k_b = jax.random.split(key, 4)

    # Small shapes consistent with the module (Cin = Cout = 3, 3x3 kernel).
    N, C, H, W = 2, 3, 16, 16
    x = jax.random.normal(k_x, (N, C, H, W), dtype=jnp.float32)

    fan_in = C * 3 * 3
    conv_w = jax.random.normal(k_w, (3, C, 3, 3), dtype=jnp.float32) / jnp.sqrt(fan_in)
    conv_b = jax.random.normal(k_cb, (3,), dtype=jnp.float32) * 0.1
    gamma = jnp.ones((3,), dtype=jnp.float32)    # BatchNorm2d default weight
    beta = jnp.zeros((3,), dtype=jnp.float32)    # BatchNorm2d default bias
    bias = jax.random.normal(k_b, (3,), dtype=jnp.float32) * 0.1

    fwd = jax.jit(conv_bn_bias)
    out = fwd(x, conv_w, conv_b, gamma, beta, bias)
    jax.block_until_ready(out)

    # Pure-JAX reference (includes conv bias to match PyTorch exactly; it is
    # analytically canceled by the training-mode BN mean subtraction).
    ref_conv = jax.lax.conv_general_dilated(
        x, conv_w, window_strides=(1, 1), padding="VALID",
        dimension_numbers=("NCHW", "OIHW", "NCHW"),
    ) + conv_b.reshape(1, 3, 1, 1)
    m = jnp.mean(ref_conv, axis=(0, 2, 3), keepdims=True)
    v = jnp.mean((ref_conv - m) ** 2, axis=(0, 2, 3), keepdims=True)
    ref = (ref_conv - m) * jax.lax.rsqrt(v + EPS)
    ref = ref * gamma.reshape(1, 3, 1, 1) + beta.reshape(1, 3, 1, 1)
    ref = ref + bias.reshape(1, 3, 1, 1)

    assert out.shape == (N, 3, H - 2, W - 2)
    err = float(jnp.max(jnp.abs(out - ref)))
    assert err < 1e-4, err

    print("KERNEL_OK")
</pallas_src>

<mosaic_0001>
module attributes {stable_mosaic.version = 11 : i64} {
  func.func @kernel(%arg0: i32, %arg1: i32, %arg2: memref<1x3x256xf32, #tpu.memory_space<vmem>>, %arg3: memref<1x256xf32, #tpu.memory_space<vmem>>, %arg4: memref<81xf32, #tpu.memory_space<smem>>, %arg5: memref<6xf32, #tpu.memory_space<smem>>, %arg6: memref<1x3x256xf32, #tpu.memory_space<vmem>>, %arg7: memref<2x3x256xf32, #tpu.memory_space<vmem>>, %arg8: memref<2x3x256xf32, #tpu.memory_space<vmem>>, %arg9: memref<6xf32, #tpu.memory_space<smem>>) attributes {dimension_semantics = [#tpu.dimension_semantics<arbitrary>, #tpu.dimension_semantics<arbitrary>], iteration_bounds = array<i64: 2, 2>, scalar_prefetch = 0 : i64, scratch_operands = 3 : i64, tpu.core_type = #tpu.core_type<tc>, window_params = [{transform_indices = @transform_0, window_bounds = array<i64: 1, 3, 256>}, {pipeline_mode = #tpu.pipeline_mode<synchronous>, transform_indices = @transform_1, window_bounds = array<i64: 1, 256>}, {transform_indices = @transform_2, window_bounds = array<i64: 81>}, {transform_indices = @transform_3, window_bounds = array<i64: 6>}, {transform_indices = @transform_4, window_bounds = array<i64: 1, 3, 256>}]} {
    %c0_i32 = arith.constant 0 : i32
    %0 = arith.cmpi eq, %arg0, %c0_i32 : i32
    %c0_i32_0 = arith.constant 0 : i32
    %1 = arith.cmpi eq, %arg1, %c0_i32_0 : i32
    %2 = arith.andi %0, %1 : i1
    %3 = arith.extui %2 : i1 to i32
    %c0_i32_1 = arith.constant 0 : i32
    %4 = arith.cmpi ne, %3, %c0_i32_1 : i32
    scf.if %4 {
      %cst = arith.constant 0.000000e+00 : f32
      %16 = vector.broadcast %cst : f32 to vector<2x3x256xf32>
      %c0 = arith.constant 0 : index
      %c0_8 = arith.constant 0 : index
      %c0_9 = arith.constant 0 : index
      %17 = vector.load %arg8[%c0, %c0_8, %c0_9] : memref<2x3x256xf32, #tpu.memory_space<vmem>>, vector<2x3x256xf32>
      tpu.vector_store %arg8[%c0, %c0_8, %c0_9], %16 {strides = array<i32>} : memref<2x3x256xf32, #tpu.memory_space<vmem>>, vector<2x3x256xf32>,
    } else {
    }
    %c0_i32_2 = arith.constant 0 : i32
    %5 = arith.cmpi eq, %arg0, %c0_i32_2 : i32
    %6 = arith.extui %5 : i1 to i32
    %c0_i32_3 = arith.constant 0 : i32
    %7 = arith.cmpi ne, %6, %c0_i32_3 : i32
    scf.if %7 {
      %c0 = arith.constant 0 : index
      %c0_8 = arith.constant 0 : index
      %c0_9 = arith.constant 0 : index
      %16 = vector.load %arg2[%c0, %c0_8, %c0_9] : memref<1x3x256xf32, #tpu.memory_space<vmem>>, vector<1x3x256xf32>
      %17 = vector.shape_cast %16 : vector<1x3x256xf32> to vector<3x256xf32>
      %c0_10 = arith.constant 0 : index
      %c0_11 = arith.constant 0 : index
      %18 = vector.load %arg3[%c0_10, %c0_11] : memref<1x256xf32, #tpu.memory_space<vmem>>, vector<1x256xf32>
      %19 = vector.extract_strided_slice %17 {offsets = [0, 0], sizes = [1, 256], strides = [1, 1]} : vector<3x256xf32> to vector<1x256xf32>
      %c0_12 = arith.constant 0 : index
      %20 = memref.load %arg4[%c0_12] : memref<81xf32, #tpu.memory_space<smem>>
      %21 = vector.broadcast %20 : f32 to vector<1x256xf32>
      %22 = arith.mulf %21, %19 : vector<1x256xf32>
      %c27 = arith.constant 27 : index
      %23 = memref.load %arg4[%c27] : memref<81xf32, #tpu.memory_space<smem>>
      %24 = vector.broadcast %23 : f32 to vector<1x256xf32>
      %25 = arith.mulf %24, %19 : vector<1x256xf32>
      %c54 = arith.constant 54 : index
      %26 = memref.load %arg4[%c54] : memref<81xf32, #tpu.memory_space<smem>>
      %27 = vector.broadcast %26 : f32 to vector<1x256xf32>
      %28 = arith.mulf %27, %19 : vector<1x256xf32>
      %29 = vector.extract_strided_slice %17 {offsets = [1, 0], sizes = [1, 256], strides = [1, 1]} : vector<3x256xf32> to vector<1x256xf32>
      %c9 = arith.constant 9 : index
      %30 = memref.load %arg4[%c9] : memref<81xf32, #tpu.memory_space<smem>>
      %31 = vector.broadcast %30 : f32 to vector<1x256xf32>
      %32 = arith.mulf %31, %29 : vector<1x256xf32>
      %33 = arith.addf %22, %32 : vector<1x256xf32>
      %c36 = arith.constant 36 : index
      %34 = memref.load %arg4[%c36] : memref<81xf32, #tpu.memory_space<smem>>
      %35 = vector.broadcast %34 : f32 to vector<1x256xf32>
      %36 = arith.mulf %35, %29 : vector<1x256xf32>
      %37 = arith.addf %25, %36 : vector<1x256xf32>
      %c63 = arith.constant 63 : index
      %38 = memref.load %arg4[%c63] : memref<81xf32, #tpu.memory_space<smem>>
      %39 = vector.broadcast %38 : f32 to vector<1x256xf32>
      %40 = arith.mulf %39, %29 : vector<1x256xf32>
      %41 = arith.addf %28, %40 : vector<1x256xf32>
      %42 = vector.extract_strided_slice %17 {offsets = [2, 0], sizes = [1, 256], strides = [1, 1]} : vector<3x256xf32> to vector<1x256xf32>
      %c18 = arith.constant 18 : index
      %43 = memref.load %arg4[%c18] : memref<81xf32, #tpu.memory_space<smem>>
      %44 = vector.broadcast %43 : f32 to vector<1x256xf32>
      %45 = arith.mulf %44, %42 : vector<1x256xf32>
      %46 = arith.addf %33, %45 : vector<1x256xf32>
      %c45 = arith.constant 45 : index
      %47 = memref.load %arg4[%c45] : memref<81xf32, #tpu.memory_space<smem>>
      %48 = vector.broadcast %47 : f32 to vector<1x256xf32>
      %49 = arith.mulf %48, %42 : vector<1x256xf32>
      %50 = arith.addf %37, %49 : vector<1x256xf32>
      %c72 = arith.constant 72 : index
      %51 = memref.load %arg4[%c72] : memref<81xf32, #tpu.memory_space<smem>>
      %52 = vector.broadcast %51 : f32 to vector<1x256xf32>
      %53 = arith.mulf %52, %42 : vector<1x256xf32>
      %54 = arith.addf %41, %53 : vector<1x256xf32>
      %c255_i32 = arith.constant 255 : i32
      %55 = tpu.dynamic_rotate %17 by %c255_i32 dim 1 : vector<3x256xf32>, i32 -> vector<3x256xf32>
      %56 = vector.extract_strided_slice %55 {offsets = [0, 0], sizes = [1, 256], strides = [1, 1]} : vector<3x256xf32> to vector<1x256xf32>
      %c1 = arith.constant 1 : index
      %57 = memref.load %arg4[%c1] : memref<81xf32, #tpu.memory_space<smem>>
      %58 = vector.broadcast %57 : f32 to vector<1x256xf32>
      %59 = arith.mulf %58, %56 : vector<1x256xf32>
      %60 = arith.addf %46, %59 : vector<1x256xf32>
      %c28 = arith.constant 28 : index
      %61 = memref.load %arg4[%c28] : memref<81xf32, #tpu.memory_space<smem>>
      %62 = vector.broadcast %61 : f32 to vector<1x256xf32>
      %63 = arith.mulf %62, %56 : vector<1x256xf32>
      %64 = arith.addf %50, %63 : vector<1x256xf32>
      %c55 = arith.constant 55 : index
      %65 = memref.load %arg4[%c55] : memref<81xf32, #tpu.memory_space<smem>>
      %66 = vector.broadcast %65 : f32 to vector<1x256xf32>
      %67 = arith.mulf %66, %56 : vector<1x256xf32>
      %68 = arith.addf %54, %67 : vector<1x256xf32>
      %69 = vector.extract_strided_slice %55 {offsets = [1, 0], sizes = [1, 256], strides = [1, 1]} : vector<3x256xf32> to vector<1x256xf32>
      %c10 = arith.constant 10 : index
      %70 = memref.load %arg4[%c10] : memref<81xf32, #tpu.memory_space<smem>>
      %71 = vector.broadcast %70 : f32 to vector<1x256xf32>
      %72 = arith.mulf %71, %69 : vector<1x256xf32>
      %73 = arith.addf %60, %72 : vector<1x256xf32>
      %c37 = arith.constant 37 : index
      %74 = memref.load %arg4[%c37] : memref<81xf32, #tpu.memory_space<smem>>
      %75 = vector.broadcast %74 : f32 to vector<1x256xf32>
      %76 = arith.mulf %75, %69 : vector<1x256xf32>
      %77 = arith.addf %64, %76 : vector<1x256xf32>
      %c64 = arith.constant 64 : index
      %78 = memref.load %arg4[%c64] : memref<81xf32, #tpu.memory_space<smem>>
      %79 = vector.broadcast %78 : f32 to vector<1x256xf32>
      %80 = arith.mulf %79, %69 : vector<1x256xf32>
      %81 = arith.addf %68, %80 : vector<1x256xf32>
      %82 = vector.extract_strided_slice %55 {offsets = [2, 0], sizes = [1, 256], strides = [1, 1]} : vector<3x256xf32> to vector<1x256xf32>
      %c19 = arith.constant 19 : index
      %83 = memref.load %arg4[%c19] : memref<81xf32, #tpu.memory_space<smem>>
      %84 = vector.broadcast %83 : f32 to vector<1x256xf32>
      %85 = arith.mulf %84, %82 : vector<1x256xf32>
      %86 = arith.addf %73, %85 : vector<1x256xf32>
      %c46 = arith.constant 46 : index
      %87 = memref.load %arg4[%c46] : memref<81xf32, #tpu.memory_space<smem>>
      %88 = vector.broadcast %87 : f32 to vector<1x256xf32>
      %89 = arith.mulf %88, %82 : vector<1x256xf32>
      %90 = arith.addf %77, %89 : vector<1x256xf32>
      %c73 = arith.constant 73 : index
      %91 = memref.load %arg4[%c73] : memref<81xf32, #tpu.memory_space<smem>>
      %92 = vector.broadcast %91 : f32 to vector<1x256xf32>
      %93 = arith.mulf %92, %82 : vector<1x256xf32>
      %94 = arith.addf %81, %93 : vector<1x256xf32>
      %c254_i32 = arith.constant 254 : i32
      %95 = tpu.dynamic_rotate %17 by %c254_i32 dim 1 : vector<3x256xf32>, i32 -> vector<3x256xf32>
      %96 = vector.extract_strided_slice %95 {offsets = [0, 0], sizes = [1, 256], strides = [1, 1]} : vector<3x256xf32> to vector<1x256xf32>
      %c2 = arith.constant 2 : index
      %97 = memref.load %arg4[%c2] : memref<81xf32, #tpu.memory_space<smem>>
      %98 = vector.broadcast %97 : f32 to vector<1x256xf32>
      %99 = arith.mulf %98, %96 : vector<1x256xf32>
      %100 = arith.addf %86, %99 : vector<1x256xf32>
      %c29 = arith.constant 29 : index
      %101 = memref.load %arg4[%c29] : memref<81xf32, #tpu.memory_space<smem>>
      %102 = vector.broadcast %101 : f32 to vector<1x256xf32>
      %103 = arith.mulf %102, %96 : vector<1x256xf32>
      %104 = arith.addf %90, %103 : vector<1x256xf32>
      %c56 = arith.constant 56 : index
      %105 = memref.load %arg4[%c56] : memref<81xf32, #tpu.memory_space<smem>>
      %106 = vector.broadcast %105 : f32 to vector<1x256xf32>
      %107 = arith.mulf %106, %96 : vector<1x256xf32>
      %108 = arith.addf %94, %107 : vector<1x256xf32>
      %109 = vector.extract_strided_slice %95 {offsets = [1, 0], sizes = [1, 256], strides = [1, 1]} : vector<3x256xf32> to vector<1x256xf32>
      %c11 = arith.constant 11 : index
      %110 = memref.load %arg4[%c11] : memref<81xf32, #tpu.memory_space<smem>>
      %111 = vector.broadcast %110 : f32 to vector<1x256xf32>
      %112 = arith.mulf %111, %109 : vector<1x256xf32>
      %113 = arith.addf %100, %112 : vector<1x256xf32>
      %c38 = arith.constant 38 : index
      %114 = memref.load %arg4[%c38] : memref<81xf32, #tpu.memory_space<smem>>
      %115 = vector.broadcast %114 : f32 to vector<1x256xf32>
      %116 = arith.mulf %115, %109 : vector<1x256xf32>
      %117 = arith.addf %104, %116 : vector<1x256xf32>
      %c65 = arith.constant 65 : index
      %118 = memref.load %arg4[%c65] : memref<81xf32, #tpu.memory_space<smem>>
      %119 = vector.broadcast %118 : f32 to vector<1x256xf32>
      %120 = arith.mulf %119, %109 : vector<1x256xf32>
      %121 = arith.addf %108, %120 : vector<1x256xf32>
      %122 = vector.extract_strided_slice %95 {offsets = [2, 0], sizes = [1, 256], strides = [1, 1]} : vector<3x256xf32> to vector<1x256xf32>
      %c20 = arith.constant 20 : index
      %123 = memref.load %arg4[%c20] : memref<81xf32, #tpu.memory_space<smem>>
      %124 = vector.broadcast %123 : f32 to vector<1x256xf32>
      %125 = arith.mulf %124, %122 : vector<1x256xf32>
      %126 = arith.addf %113, %125 : vector<1x256xf32>
      %c47 = arith.constant 47 : index
      %127 = memref.load %arg4[%c47] : memref<81xf32, #tpu.memory_space<smem>>
      %128 = vector.broadcast %127 : f32 to vector<1x256xf32>
      %129 = arith.mulf %128, %122 : vector<1x256xf32>
      %130 = arith.addf %117, %129 : vector<1x256xf32>
      %c74 = arith.constant 74 : index
      %131 = memref.load %arg4[%c74] : memref<81xf32, #tpu.memory_space<smem>>
      %132 = vector.broadcast %131 : f32 to vector<1x256xf32>
      %133 = arith.mulf %132, %122 : vector<1x256xf32>
      %134 = arith.addf %121, %133 : vector<1x256xf32>
      %c240_i32 = arith.constant 240 : i32
      %135 = tpu.dynamic_rotate %17 by %c240_i32 dim 1 : vector<3x256xf32>, i32 -> vector<3x256xf32>
      %136 = vector.extract_strided_slice %135 {offsets = [0, 0], sizes = [1, 256], strides = [1, 1]} : vector<3x256xf32> to vector<1x256xf32>
      %c3 = arith.constant 3 : index
      %137 = memref.load %arg4[%c3] : memref<81xf32, #tpu.memory_space<smem>>
      %138 = vector.broadcast %137 : f32 to vector<1x256xf32>
      %139 = arith.mulf %138, %136 : vector<1x256xf32>
      %140 = arith.addf %126, %139 : vector<1x256xf32>
      %c30 = arith.constant 30 : index
      %141 = memref.load %arg4[%c30] : memref<81xf32, #tpu.memory_space<smem>>
      %142 = vector.broadcast %141 : f32 to vector<1x256xf32>
      %143 = arith.mulf %142, %136 : vector<1x256xf32>
      %144 = arith.addf %130, %143 : vector<1x256xf32>
      %c57 = arith.constant 57 : index
      %145 = memref.load %arg4[%c57] : memref<81xf32, #tpu.memory_space<smem>>
      %146 = vector.broadcast %145 : f32 to vector<1x256xf32>
      %147 = arith.mulf %146, %136 : vector<1x256xf32>
      %148 = arith.addf %134, %147 : vector<1x256xf32>
      %149 = vector.extract_strided_slice %135 {offsets = [1, 0], sizes = [1, 256], strides = [1, 1]} : vector<3x256xf32> to vector<1x256xf32>
      %c12 = arith.constant 12 : index
      %150 = memref.load %arg4[%c12] : memref<81xf32, #tpu.memory_space<smem>>
      %151 = vector.broadcast %150 : f32 to vector<1x256xf32>
      %152 = arith.mulf %151, %149 : vector<1x256xf32>
      %153 = arith.addf %140, %152 : vector<1x256xf32>
      %c39 = arith.constant 39 : index
      %154 = memref.load %arg4[%c39] : memref<81xf32, #tpu.memory_space<smem>>
      %155 = vector.broadcast %154 : f32 to vector<1x256xf32>
      %156 = arith.mulf %155, %149 : vector<1x256xf32>
      %157 = arith.addf %144, %156 : vector<1x256xf32>
      %c66 = arith.constant 66 : index
      %158 = memref.load %arg4[%c66] : memref<81xf32, #tpu.memory_space<smem>>
      %159 = vector.broadcast %158 : f32 to vector<1x256xf32>
      %160 = arith.mulf %159, %149 : vector<1x256xf32>
      %161 = arith.addf %148, %160 : vector<1x256xf32>
      %162 = vector.extract_strided_slice %135 {offsets = [2, 0], sizes = [1, 256], strides = [1, 1]} : vector<3x256xf32> to vector<1x256xf32>
      %c21 = arith.constant 21 : index
      %163 = memref.load %arg4[%c21] : memref<81xf32, #tpu.memory_space<smem>>
      %164 = vector.broadcast %163 : f32 to vector<1x256xf32>
      %165 = arith.mulf %164, %162 : vector<1x256xf32>
      %166 = arith.addf %153, %165 : vector<1x256xf32>
      %c48 = arith.constant 48 : index
      %167 = memref.load %arg4[%c48] : memref<81xf32, #tpu.memory_space<smem>>
      %168 = vector.broadcast %167 : f32 to vector<1x256xf32>
      %169 = arith.mulf %168, %162 : vector<1x256xf32>
      %170 = arith.addf %157, %169 : vector<1x256xf32>
      %c75 = arith.constant 75 : index
      %171 = memref.load %arg4[%c75] : memref<81xf32, #tpu.memory_space<smem>>
      %172 = vector.broadcast %171 : f32 to vector<1x256xf32>
      %173 = arith.mulf %172, %162 : vector<1x256xf32>
      %174 = arith.addf %161, %173 : vector<1x256xf32>
      %c239_i32 = arith.constant 239 : i32
      %175 = tpu.dynamic_rotate %17 by %c239_i32 dim 1 : vector<3x256xf32>, i32 -> vector<3x256xf32>
      %176 = vector.extract_strided_slice %175 {offsets = [0, 0], sizes = [1, 256], strides = [1, 1]} : vector<3x256xf32> to vector<1x256xf32>
      %c4 = arith.constant 4 : index
      %177 = memref.load %arg4[%c4] : memref<81xf32, #tpu.memory_space<smem>>
      %178 = vector.broadcast %177 : f32 to vector<1x256xf32>
      %179 = arith.mulf %178, %176 : vector<1x256xf32>
      %180 = arith.addf %166, %179 : vector<1x256xf32>
      %c31 = arith.constant 31 : index
      %181 = memref.load %arg4[%c31] : memref<81xf32, #tpu.memory_space<smem>>
      %182 = vector.broadcast %181 : f32 to vector<1x256xf32>
      %183 = arith.mulf %182, %176 : vector<1x256xf32>
      %184 = arith.addf %170, %183 : vector<1x256xf32>
      %c58 = arith.constant 58 : index
      %185 = memref.load %arg4[%c58] : memref<81xf32, #tpu.memory_space<smem>>
      %186 = vector.broadcast %185 : f32 to vector<1x256xf32>
      %187 = arith.mulf %186, %176 : vector<1x256xf32>
      %188 = arith.addf %174, %187 : vector<1x256xf32>
      %189 = vector.extract_strided_slice %175 {offsets = [1, 0], sizes = [1, 256], strides = [1, 1]} : vector<3x256xf32> to vector<1x256xf32>
      %c13 = arith.constant 13 : index
      %190 = memref.load %arg4[%c13] : memref<81xf32, #tpu.memory_space<smem>>
      %191 = vector.broadcast %190 : f32 to vector<1x256xf32>
      %192 = arith.mulf %191, %189 : vector<1x256xf32>
      %193 = arith.addf %180, %192 : vector<1x256xf32>
      %c40 = arith.constant 40 : index
      %194 = memref.load %arg4[%c40] : memref<81xf32, #tpu.memory_space<smem>>
      %195 = vector.broadcast %194 : f32 to vector<1x256xf32>
      %196 = arith.mulf %195, %189 : vector<1x256xf32>
      %197 = arith.addf %184, %196 : vector<1x256xf32>
      %c67 = arith.constant 67 : index
      %198 = memref.load %arg4[%c67] : memref<81xf32, #tpu.memory_space<smem>>
      %199 = vector.broadcast %198 : f32 to vector<1x256xf32>
      %200 = arith.mulf %199, %189 : vector<1x256xf32>
      %201 = arith.addf %188, %200 : vector<1x256xf32>
      %202 = vector.extract_strided_slice %175 {offsets = [2, 0], sizes = [1, 256], strides = [1, 1]} : vector<3x256xf32> to vector<1x256xf32>
      %c22 = arith.constant 22 : index
      %203 = memref.load %arg4[%c22] : memref<81xf32, #tpu.memory_space<smem>>
      %204 = vector.broadcast %203 : f32 to vector<1x256xf32>
      %205 = arith.mulf %204, %202 : vector<1x256xf32>
      %206 = arith.addf %193, %205 : vector<1x256xf32>
      %c49 = arith.constant 49 : index
      %207 = memref.load %arg4[%c49] : memref<81xf32, #tpu.memory_space<smem>>
      %208 = vector.broadcast %207 : f32 to vector<1x256xf32>
      %209 = arith.mulf %208, %202 : vector<1x256xf32>
      %210 = arith.addf %197, %209 : vector<1x256xf32>
      %c76 = arith.constant 76 : index
      %211 = memref.load %arg4[%c76] : memref<81xf32, #tpu.memory_space<smem>>
      %212 = vector.broadcast %211 : f32 to vector<1x256xf32>
      %213 = arith.mulf %212, %202 : vector<1x256xf32>
      %214 = arith.addf %201, %213 : vector<1x256xf32>
      %c238_i32 = arith.constant 238 : i32
      %215 = tpu.dynamic_rotate %17 by %c238_i32 dim 1 : vector<3x256xf32>, i32 -> vector<3x256xf32>
      %216 = vector.extract_strided_slice %215 {offsets = [0, 0], sizes = [1, 256], strides = [1, 1]} : vector<3x256xf32> to vector<1x256xf32>
      %c5 = arith.constant 5 : index
      %217 = memref.load %arg4[%c5] : memref<81xf32, #tpu.memory_space<smem>>
      %218 = vector.broadcast %217 : f32 to vector<1x256xf32>
      %219 = arith.mulf %218, %216 : vector<1x256xf32>
      %220 = arith.addf %206, %219 : vector<1x256xf32>
      %c32 = arith.constant 32 : index
      %221 = memref.load %arg4[%c32] : memref<81xf32, #tpu.memory_space<smem>>
      %222 = vector.broadcast %221 : f32 to vector<1x256xf32>
      %223 = arith.mulf %222, %216 : vector<1x256xf32>
      %224 = arith.addf %210, %223 : vector<1x256xf32>
      %c59 = arith.constant 59 : index
      %225 = memref.load %arg4[%c59] : memref<81xf32, #tpu.memory_space<smem>>
      %226 = vector.broadcast %225 : f32 to vector<1x256xf32>
      %227 = arith.mulf %226, %216 : vector<1x256xf32>
      %228 = arith.addf %214, %227 : vector<1x256xf32>
      %229 = vector.extract_strided_slice %215 {offsets = [1, 0], sizes = [1, 256], strides = [1, 1]} : vector<3x256xf32> to vector<1x256xf32>
      %c14 = arith.constant 14 : index
      %230 = memref.load %arg4[%c14] : memref<81xf32, #tpu.memory_space<smem>>
      %231 = vector.broadcast %230 : f32 to vector<1x256xf32>
      %232 = arith.mulf %231, %229 : vector<1x256xf32>
      %233 = arith.addf %220, %232 : vector<1x256xf32>
      %c41 = arith.constant 41 : index
      %234 = memref.load %arg4[%c41] : memref<81xf32, #tpu.memory_space<smem>>
      %235 = vector.broadcast %234 : f32 to vector<1x256xf32>
      %236 = arith.mulf %235, %229 : vector<1x256xf32>
      %237 = arith.addf %224, %236 : vector<1x256xf32>
      %c68 = arith.constant 68 : index
      %238 = memref.load %arg4[%c68] : memref<81xf32, #tpu.memory_space<smem>>
      %239 = vector.broadcast %238 : f32 to vector<1x256xf32>
      %240 = arith.mulf %239, %229 : vector<1x256xf32>
      %241 = arith.addf %228, %240 : vector<1x256xf32>
      %242 = vector.extract_strided_slice %215 {offsets = [2, 0], sizes = [1, 256], strides = [1, 1]} : vector<3x256xf32> to vector<1x256xf32>
      %c23 = arith.constant 23 : index
      %243 = memref.load %arg4[%c23] : memref<81xf32, #tpu.memory_space<smem>>
      %244 = vector.broadcast %243 : f32 to vector<1x256xf32>
      %245 = arith.mulf %244, %242 : vector<1x256xf32>
      %246 = arith.addf %233, %245 : vector<1x256xf32>
      %c50 = arith.constant 50 : index
      %247 = memref.load %arg4[%c50] : memref<81xf32, #tpu.memory_space<smem>>
      %248 = vector.broadcast %247 : f32 to vector<1x256xf32>
      %249 = arith.mulf %248, %242 : vector<1x256xf32>
      %250 = arith.addf %237, %249 : vector<1x256xf32>
      %c77 = arith.constant 77 : index
      %251 = memref.load %arg4[%c77] : memref<81xf32, #tpu.memory_space<smem>>
      %252 = vector.broadcast %251 : f32 to vector<1x256xf32>
      %253 = arith.mulf %252, %242 : vector<1x256xf32>
      %254 = arith.addf %241, %253 : vector<1x256xf32>
      %c224_i32 = arith.constant 224 : i32
      %255 = tpu.dynamic_rotate %17 by %c224_i32 dim 1 : vector<3x256xf32>, i32 -> vector<3x256xf32>
      %256 = vector.extract_strided_slice %255 {offsets = [0, 0], sizes = [1, 256], strides = [1, 1]} : vector<3x256xf32> to vector<1x256xf32>
      %c6 = arith.constant 6 : index
      %257 = memref.load %arg4[%c6] : memref<81xf32, #tpu.memory_space<smem>>
      %258 = vector.broadcast %257 : f32 to vector<1x256xf32>
      %259 = arith.mulf %258, %256 : vector<1x256xf32>
      %260 = arith.addf %246, %259 : vector<1x256xf32>
      %c33 = arith.constant 33 : index
      %261 = memref.load %arg4[%c33] : memref<81xf32, #tpu.memory_space<smem>>
      %262 = vector.broadcast %261 : f32 to vector<1x256xf32>
      %263 = arith.mulf %262, %256 : vector<1x256xf32>
      %264 = arith.addf %250, %263 : vector<1x256xf32>
      %c60 = arith.constant 60 : index
      %265 = memref.load %arg4[%c60] : memref<81xf32, #tpu.memory_space<smem>>
      %266 = vector.broadcast %265 : f32 to vector<1x256xf32>
      %267 = arith.mulf %266, %256 : vector<1x256xf32>
      %268 = arith.addf %254, %267 : vector<1x256xf32>
      %269 = vector.extract_strided_slice %255 {offsets = [1, 0], sizes = [1, 256], strides = [1, 1]} : vector<3x256xf32> to vector<1x256xf32>
      %c15 = arith.constant 15 : index
      %270 = memref.load %arg4[%c15] : memref<81xf32, #tpu.memory_space<smem>>
      %271 = vector.broadcast %270 : f32 to vector<1x256xf32>
      %272 = arith.mulf %271, %269 : vector<1x256xf32>
      %273 = arith.addf %260, %272 : vector<1x256xf32>
      %c42 = arith.constant 42 : index
      %274 = memref.load %arg4[%c42] : memref<81xf32, #tpu.memory_space<smem>>
      %275 = vector.broadcast %274 : f32 to vector<1x256xf32>
      %276 = arith.mulf %275, %269 : vector<1x256xf32>
      %277 = arith.addf %264, %276 : vector<1x256xf32>
      %c69 = arith.constant 69 : index
      %278 = memref.load %arg4[%c69] : memref<81xf32, #tpu.memory_space<smem>>
      %279 = vector.broadcast %278 : f32 to vector<1x256xf32>
      %280 = arith.mulf %279, %269 : vector<1x256xf32>
      %281 = arith.addf %268, %280 : vector<1x256xf32>
      %282 = vector.extract_strided_slice %255 {offsets = [2, 0], sizes = [1, 256], strides = [1, 1]} : vector<3x256xf32> to vector<1x256xf32>
      %c24 = arith.constant 24 : index
      %283 = memref.load %arg4[%c24] : memref<81xf32, #tpu.memory_space<smem>>
      %284 = vector.broadcast %283 : f32 to vector<1x256xf32>
      %285 = arith.mulf %284, %282 : vector<1x256xf32>
      %286 = arith.addf %273, %285 : vector<1x256xf32>
      %c51 = arith.constant 51 : index
      %287 = memref.load %arg4[%c51] : memref<81xf32, #tpu.memory_space<smem>>
      %288 = vector.broadcast %287 : f32 to vector<1x256xf32>
      %289 = arith.mulf %288, %282 : vector<1x256xf32>
      %290 = arith.addf %277, %289 : vector<1x256xf32>
      %c78 = arith.constant 78 : index
      %291 = memref.load %arg4[%c78] : memref<81xf32, #tpu.memory_space<smem>>
      %292 = vector.broadcast %291 : f32 to vector<1x256xf32>
      %293 = arith.mulf %292, %282 : vector<1x256xf32>
      %294 = arith.addf %281, %293 : vector<1x256xf32>
      %c223_i32 = arith.constant 223 : i32
      %295 = tpu.dynamic_rotate %17 by %c223_i32 dim 1 : vector<3x256xf32>, i32 -> vector<3x256xf32>
      %296 = vector.extract_strided_slice %295 {offsets = [0, 0], sizes = [1, 256], strides = [1, 1]} : vector<3x256xf32> to vector<1x256xf32>
      %c7 = arith.constant 7 : index
      %297 = memref.load %arg4[%c7] : memref<81xf32, #tpu.memory_space<smem>>
      %298 = vector.broadcast %297 : f32 to vector<1x256xf32>
      %299 = arith.mulf %298, %296 : vector<1x256xf32>
      %300 = arith.addf %286, %299 : vector<1x256xf32>
      %c34 = arith.constant 34 : index
      %301 = memref.load %arg4[%c34] : memref<81xf32, #tpu.memory_space<smem>>
      %302 = vector.broadcast %301 : f32 to vector<1x256xf32>
      %303 = arith.mulf %302, %296 : vector<1x256xf32>
      %304 = arith.addf %290, %303 : vector<1x256xf32>
      %c61 = arith.constant 61 : index
      %305 = memref.load %arg4[%c61] : memref<81xf32, #tpu.memory_space<smem>>
      %306 = vector.broadcast %305 : f32 to vector<1x256xf32>
      %307 = arith.mulf %306, %296 : vector<1x256xf32>
      %308 = arith.addf %294, %307 : vector<1x256xf32>
      %309 = vector.extract_strided_slice %295 {offsets = [1, 0], sizes = [1, 256], strides = [1, 1]} : vector<3x256xf32> to vector<1x256xf32>
      %c16 = arith.constant 16 : index
      %310 = memref.load %arg4[%c16] : memref<81xf32, #tpu.memory_space<smem>>
      %311 = vector.broadcast %310 : f32 to vector<1x256xf32>
      %312 = arith.mulf %311, %309 : vector<1x256xf32>
      %313 = arith.addf %300, %312 : vector<1x256xf32>
      %c43 = arith.constant 43 : index
      %314 = memref.load %arg4[%c43] : memref<81xf32, #tpu.memory_space<smem>>
      %315 = vector.broadcast %314 : f32 to vector<1x256xf32>
      %316 = arith.mulf %315, %309 : vector<1x256xf32>
      %317 = arith.addf %304, %316 : vector<1x256xf32>
      %c70 = arith.constant 70 : index
      %318 = memref.load %arg4[%c70] : memref<81xf32, #tpu.memory_space<smem>>
      %319 = vector.broadcast %318 : f32 to vector<1x256xf32>
      %320 = arith.mulf %319, %309 : vector<1x256xf32>
      %321 = arith.addf %308, %320 : vector<1x256xf32>
      %322 = vector.extract_strided_slice %295 {offsets = [2, 0], sizes = [1, 256], strides = [1, 1]} : vector<3x256xf32> to vector<1x256xf32>
      %c25 = arith.constant 25 : index
      %323 = memref.load %arg4[%c25] : memref<81xf32, #tpu.memory_space<smem>>
      %324 = vector.broadcast %323 : f32 to vector<1x256xf32>
      %325 = arith.mulf %324, %322 : vector<1x256xf32>
      %326 = arith.addf %313, %325 : vector<1x256xf32>
      %c52 = arith.constant 52 : index
      %327 = memref.load %arg4[%c52] : memref<81xf32, #tpu.memory_space<smem>>
      %328 = vector.broadcast %327 : f32 to vector<1x256xf32>
      %329 = arith.mulf %328, %322 : vector<1x256xf32>
      %330 = arith.addf %317, %329 : vector<1x256xf32>
      %c79 = arith.constant 79 : index
      %331 = memref.load %arg4[%c79] : memref<81xf32, #tpu.memory_space<smem>>
      %332 = vector.broadcast %331 : f32 to vector<1x256xf32>
      %333 = arith.mulf %332, %322 : vector<1x256xf32>
      %334 = arith.addf %321, %333 : vector<1x256xf32>
      %c222_i32 = arith.constant 222 : i32
      %335 = tpu.dynamic_rotate %17 by %c222_i32 dim 1 : vector<3x256xf32>, i32 -> vector<3x256xf32>
      %336 = vector.extract_strided_slice %335 {offsets = [0, 0], sizes = [1, 256], strides = [1, 1]} : vector<3x256xf32> to vector<1x256xf32>
      %c8 = arith.constant 8 : index
      %337 = memref.load %arg4[%c8] : memref<81xf32, #tpu.memory_space<smem>>
      %338 = vector.broadcast %337 : f32 to vector<1x256xf32>
      %339 = arith.mulf %338, %336 : vector<1x256xf32>
      %340 = arith.addf %326, %339 : vector<1x256xf32>
      %c35 = arith.constant 35 : index
      %341 = memref.load %arg4[%c35] : memref<81xf32, #tpu.memory_space<smem>>
      %342 = vector.broadcast %341 : f32 to vector<1x256xf32>
      %343 = arith.mulf %342, %336 : vector<1x256xf32>
      %344 = arith.addf %330, %343 : vector<1x256xf32>
      %c62 = arith.constant 62 : index
      %345 = memref.load %arg4[%c62] : memref<81xf32, #tpu.memory_space<smem>>
      %346 = vector.broadcast %345 : f32 to vector<1x256xf32>
      %347 = arith.mulf %346, %336 : vector<1x256xf32>
      %348 = arith.addf %334, %347 : vector<1x256xf32>
      %349 = vector.extract_strided_slice %335 {offsets = [1, 0], sizes = [1, 256], strides = [1, 1]} : vector<3x256xf32> to vector<1x256xf32>
      %c17 = arith.constant 17 : index
      %350 = memref.load %arg4[%c17] : memref<81xf32, #tpu.memory_space<smem>>
      %351 = vector.broadcast %350 : f32 to vector<1x256xf32>
      %352 = arith.mulf %351, %349 : vector<1x256xf32>
      %353 = arith.addf %340, %352 : vector<1x256xf32>
      %c44 = arith.constant 44 : index
      %354 = memref.load %arg4[%c44] : memref<81xf32, #tpu.memory_space<smem>>
      %355 = vector.broadcast %354 : f32 to vector<1x256xf32>
      %356 = arith.mulf %355, %349 : vector<1x256xf32>
      %357 = arith.addf %344, %356 : vector<1x256xf32>
      %c71 = arith.constant 71 : index
      %358 = memref.load %arg4[%c71] : memref<81xf32, #tpu.memory_space<smem>>
      %359 = vector.broadcast %358 : f32 to vector<1x256xf32>
      %360 = arith.mulf %359, %349 : vector<1x256xf32>
      %361 = arith.addf %348, %360 : vector<1x256xf32>
      %362 = vector.extract_strided_slice %335 {offsets = [2, 0], sizes = [1, 256], strides = [1, 1]} : vector<3x256xf32> to vector<1x256xf32>
      %c26 = arith.constant 26 : index
      %363 = memref.load %arg4[%c26] : memref<81xf32, #tpu.memory_space<smem>>
      %364 = vector.broadcast %363 : f32 to vector<1x256xf32>
      %365 = arith.mulf %364, %362 : vector<1x256xf32>
      %366 = arith.addf %353, %365 : vector<1x256xf32>
      %c53 = arith.constant 53 : index
      %367 = memref.load %arg4[%c53] : memref<81xf32, #tpu.memory_space<smem>>
      %368 = vector.broadcast %367 : f32 to vector<1x256xf32>
      %369 = arith.mulf %368, %362 : vector<1x256xf32>
      %370 = arith.addf %357, %369 : vector<1x256xf32>
      %c80 = arith.constant 80 : index
      %371 = memref.load %arg4[%c80] : memref<81xf32, #tpu.memory_space<smem>>
      %372 = vector.broadcast %371 : f32 to vector<1x256xf32>
      %373 = arith.mulf %372, %362 : vector<1x256xf32>
      %374 = arith.addf %361, %373 : vector<1x256xf32>
      %375 = tpu.concatenate %366, %370, %374 in 0 : vector<1x256xf32>, vector<1x256xf32>, vector<1x256xf32> -> vector<3x256xf32>
      %376 = arith.index_cast %arg1 : i32 to index
      %c0_13 = arith.constant 0 : index
      %c0_14 = arith.constant 0 : index
      %377 = vector.load %arg7[%376, %c0_13, %c0_14] : memref<2x3x256xf32, #tpu.memory_space<vmem>>, vector<1x3x256xf32>
      %378 = vector.shape_cast %377 : vector<1x3x256xf32> to vector<3x256xf32>
      %379 = vector.shape_cast %375 : vector<3x256xf32> to vector<1x3x256xf32>
      tpu.vector_store %arg7[%376, %c0_13, %c0_14], %379 {strides = array<i32>} : memref<2x3x256xf32, #tpu.memory_space<vmem>>, vector<1x3x256xf32>,
      %380 = vector.broadcast %18 : vector<1x256xf32> to vector<3x256xf32>
      %381 = arith.mulf %375, %380 : vector<3x256xf32>
      %c0_15 = arith.constant 0 : index
      %c0_16 = arith.constant 0 : index
      %c0_17 = arith.constant 0 : index
      %382 = vector.load %arg8[%c0_15, %c0_16, %c0_17] : memref<2x3x256xf32, #tpu.memory_space<vmem>>, vector<1x3x256xf32>
      %383 = vector.shape_cast %382 : vector<1x3x256xf32> to vector<3x256xf32>
      %384 = arith.addf %383, %381 : vector<3x256xf32>
      %c0_18 = arith.constant 0 : index
      %c0_19 = arith.constant 0 : index
      %c0_20 = arith.constant 0 : index
      %385 = vector.load %arg8[%c0_18, %c0_19, %c0_20] : memref<2x3x256xf32, #tpu.memory_space<vmem>>, vector<1x3x256xf32>
      %386 = vector.shape_cast %385 : vector<1x3x256xf32> to vector<3x256xf32>
      %387 = vector.shape_cast %384 : vector<3x256xf32> to vector<1x3x256xf32>
      tpu.vector_store %arg8[%c0_18, %c0_19, %c0_20], %387 {strides = array<i32>} : memref<2x3x256xf32, #tpu.memory_space<vmem>>, vector<1x3x256xf32>,
      %c1_21 = arith.constant 1 : index
      %c0_22 = arith.constant 0 : index
      %c0_23 = arith.constant 0 : index
      %388 = vector.load %arg8[%c1_21, %c0_22, %c0_23] : memref<2x3x256xf32, #tpu.memory_space<vmem>>, vector<1x3x256xf32>
      %389 = vector.shape_cast %388 : vector<1x3x256xf32> to vector<3x256xf32>
      %390 = arith.mulf %381, %375 : vector<3x256xf32>
      %391 = arith.addf %389, %390 : vector<3x256xf32>
      %c1_24 = arith.constant 1 : index
      %c0_25 = arith.constant 0 : index
      %c0_26 = arith.constant 0 : index
      %392 = vector.load %arg8[%c1_24, %c0_25, %c0_26] : memref<2x3x256xf32, #tpu.memory_space<vmem>>, vector<1x3x256xf32>
      %393 = vector.shape_cast %392 : vector<1x3x256xf32> to vector<3x256xf32>
      %394 = vector.shape_cast %391 : vector<3x256xf32> to vector<1x3x256xf32>
      tpu.vector_store %arg8[%c1_24, %c0_25, %c0_26], %394 {strides = array<i32>} : memref<2x3x256xf32, #tpu.memory_space<vmem>>, vector<1x3x256xf32>,
    } else {
    }
    %c1_i32 = arith.constant 1 : i32
    %8 = arith.cmpi eq, %arg0, %c1_i32 : i32
    %c0_i32_4 = arith.constant 0 : i32
    %9 = arith.cmpi eq, %arg1, %c0_i32_4 : i32
    %10 = arith.andi %8, %9 : i1
    %11 = arith.extui %10 : i1 to i32
    %c0_i32_5 = arith.constant 0 : i32
    %12 = arith.cmpi ne, %11, %c0_i32_5 : i32
    scf.if %12 {
      %c0 = arith.constant 0 : index
      %c0_8 = arith.constant 0 : index
      %c0_9 = arith.constant 0 : index
      %16 = vector.load %arg8[%c0, %c0_8, %c0_9] : memref<2x3x256xf32, #tpu.memory_space<vmem>>, vector<1x1x256xf32>
      %17 = vector.shape_cast %16 : vector<1x1x256xf32> to vector<1x256xf32>
      %18 = vector.shape_cast %17 : vector<1x256xf32> to vector<1x1x256xf32>
      %cst = arith.constant dense<0.000000e+00> : vector<1xf32>
      %19 = vector.multi_reduction <add>, %18, %cst [1, 2] : vector<1x1x256xf32> to vector<1xf32>
      %20 = vector.shape_cast %19 : vector<1xf32> to vector<1x1x1xf32>
      %21 = vector.extract %20[0, 0, 0] : f32 from vector<1x1x1xf32>
      %c1 = arith.constant 1 : index
      %c0_10 = arith.constant 0 : index
      %c0_11 = arith.constant 0 : index
      %22 = vector.load %arg8[%c1, %c0_10, %c0_11] : memref<2x3x256xf32, #tpu.memory_space<vmem>>, vector<1x1x256xf32>
      %23 = vector.shape_cast %22 : vector<1x1x256xf32> to vector<1x256xf32>
      %24 = vector.shape_cast %23 : vector<1x256xf32> to vector<1x1x256xf32>
      %cst_12 = arith.constant dense<0.000000e+00> : vector<1xf32>
      %25 = vector.multi_reduction <add>, %24, %cst_12 [1, 2] : vector<1x1x256xf32> to vector<1xf32>
      %26 = vector.shape_cast %25 : vector<1xf32> to vector<1x1x1xf32>
      %27 = vector.extract %26[0, 0, 0] : f32 from vector<1x1x1xf32>
      %cst_13 = arith.constant 3.920000e+02 : f32
      %28 = arith.divf %21, %cst_13 : f32
      %cst_14 = arith.constant 3.920000e+02 : f32
      %29 = arith.divf %27, %cst_14 : f32
      %30 = arith.mulf %28, %28 : f32
      %31 = arith.subf %29, %30 : f32
      %cst_15 = arith.constant 0.000000e+00 : f32
      %32 = arith.maximumf %31, %cst_15 : f32
      %c0_16 = arith.constant 0 : index
      %33 = memref.load %arg5[%c0_16] : memref<6xf32, #tpu.memory_space<smem>>
      %cst_17 = arith.constant 9.99999974E-6 : f32
      %34 = arith.addf %32, %cst_17 : f32
      %35 = math.rsqrt %34 : f32
      %36 = arith.mulf %33, %35 : f32
      %c0_18 = arith.constant 0 : index
      %37 = memref.load %arg9[%c0_18] : memref<6xf32, #tpu.memory_space<smem>>
      memref.store %36, %arg9[%c0_18] : memref<6xf32, #tpu.memory_space<smem>>
      %c3 = arith.constant 3 : index
      %38 = memref.load %arg5[%c3] : memref<6xf32, #tpu.memory_space<smem>>
      %39 = arith.mulf %28, %36 : f32
      %40 = arith.subf %38, %39 : f32
      %c3_19 = arith.constant 3 : index
      %41 = memref.load %arg9[%c3_19] : memref<6xf32, #tpu.memory_space<smem>>
      memref.store %40, %arg9[%c3_19] : memref<6xf32, #tpu.memory_space<smem>>
      %c0_20 = arith.constant 0 : index
      %c1_21 = arith.constant 1 : index
      %c0_22 = arith.constant 0 : index
      %42 = vector.load %arg8[%c0_20, %c1_21, %c0_22] : memref<2x3x256xf32, #tpu.memory_space<vmem>>, vector<1x1x256xf32>
      %43 = vector.shape_cast %42 : vector<1x1x256xf32> to vector<1x256xf32>
      %44 = vector.shape_cast %43 : vector<1x256xf32> to vector<1x1x256xf32>
      %cst_23 = arith.constant dense<0.000000e+00> : vector<1xf32>
      %45 = vector.multi_reduction <add>, %44, %cst_23 [1, 2] : vector<1x1x256xf32> to vector<1xf32>
      %46 = vector.shape_cast %45 : vector<1xf32> to vector<1x1x1xf32>
      %47 = vector.extract %46[0, 0, 0] : f32 from vector<1x1x1xf32>
      %c1_24 = arith.constant 1 : index
      %c1_25 = arith.constant 1 : index
      %c0_26 = arith.constant 0 : index
      %48 = vector.load %arg8[%c1_24, %c1_25, %c0_26] : memref<2x3x256xf32, #tpu.memory_space<vmem>>, vector<1x1x256xf32>
      %49 = vector.shape_cast %48 : vector<1x1x256xf32> to vector<1x256xf32>
      %50 = vector.shape_cast %49 : vector<1x256xf32> to vector<1x1x256xf32>
      %cst_27 = arith.constant dense<0.000000e+00> : vector<1xf32>
      %51 = vector.multi_reduction <add>, %50, %cst_27 [1, 2] : vector<1x1x256xf32> to vector<1xf32>
      %52 = vector.shape_cast %51 : vector<1xf32> to vector<1x1x1xf32>
      %53 = vector.extract %52[0, 0, 0] : f32 from vector<1x1x1xf32>
      %cst_28 = arith.constant 3.920000e+02 : f32
      %54 = arith.divf %47, %cst_28 : f32
      %cst_29 = arith.constant 3.920000e+02 : f32
      %55 = arith.divf %53, %cst_29 : f32
      %56 = arith.mulf %54, %54 : f32
      %57 = arith.subf %55, %56 : f32
      %cst_30 = arith.constant 0.000000e+00 : f32
      %58 = arith.maximumf %57, %cst_30 : f32
      %c1_31 = arith.constant 1 : index
      %59 = memref.load %arg5[%c1_31] : memref<6xf32, #tpu.memory_space<smem>>
      %cst_32 = arith.constant 9.99999974E-6 : f32
      %60 = arith.addf %58, %cst_32 : f32
      %61 = math.rsqrt %60 : f32
      %62 = arith.mulf %59, %61 : f32
      %c1_33 = arith.constant 1 : index
      %63 = memref.load %arg9[%c1_33] : memref<6xf32, #tpu.memory_space<smem>>
      memref.store %62, %arg9[%c1_33] : memref<6xf32, #tpu.memory_space<smem>>
      %c4 = arith.constant 4 : index
      %64 = memref.load %arg5[%c4] : memref<6xf32, #tpu.memory_space<smem>>
      %65 = arith.mulf %54, %62 : f32
      %66 = arith.subf %64, %65 : f32
      %c4_34 = arith.constant 4 : index
      %67 = memref.load %arg9[%c4_34] : memref<6xf32, #tpu.memory_space<smem>>
      memref.store %66, %arg9[%c4_34] : memref<6xf32, #tpu.memory_space<smem>>
      %c0_35 = arith.constant 0 : index
      %c2 = arith.constant 2 : index
      %c0_36 = arith.constant 0 : index
      %68 = vector.load %arg8[%c0_35, %c2, %c0_36] : memref<2x3x256xf32, #tpu.memory_space<vmem>>, vector<1x1x256xf32>
      %69 = vector.shape_cast %68 : vector<1x1x256xf32> to vector<1x256xf32>
      %70 = vector.shape_cast %69 : vector<1x256xf32> to vector<1x1x256xf32>
      %cst_37 = arith.constant dense<0.000000e+00> : vector<1xf32>
      %71 = vector.multi_reduction <add>, %70, %cst_37 [1, 2] : vector<1x1x256xf32> to vector<1xf32>
      %72 = vector.shape_cast %71 : vector<1xf32> to vector<1x1x1xf32>
      %73 = vector.extract %72[0, 0, 0] : f32 from vector<1x1x1xf32>
      %c1_38 = arith.constant 1 : index
      %c2_39 = arith.constant 2 : index
      %c0_40 = arith.constant 0 : index
      %74 = vector.load %arg8[%c1_38, %c2_39, %c0_40] : memref<2x3x256xf32, #tpu.memory_space<vmem>>, vector<1x1x256xf32>
      %75 = vector.shape_cast %74 : vector<1x1x256xf32> to vector<1x256xf32>
      %76 = vector.shape_cast %75 : vector<1x256xf32> to vector<1x1x256xf32>
      %cst_41 = arith.constant dense<0.000000e+00> : vector<1xf32>
      %77 = vector.multi_reduction <add>, %76, %cst_41 [1, 2] : vector<1x1x256xf32> to vector<1xf32>
      %78 = vector.shape_cast %77 : vector<1xf32> to vector<1x1x1xf32>
      %79 = vector.extract %78[0, 0, 0] : f32 from vector<1x1x1xf32>
      %cst_42 = arith.constant 3.920000e+02 : f32
      %80 = arith.divf %73, %cst_42 : f32
      %cst_43 = arith.constant 3.920000e+02 : f32
      %81 = arith.divf %79, %cst_43 : f32
      %82 = arith.mulf %80, %80 : f32
      %83 = arith.subf %81, %82 : f32
      %cst_44 = arith.constant 0.000000e+00 : f32
      %84 = arith.maximumf %83, %cst_44 : f32
      %c2_45 = arith.constant 2 : index
      %85 = memref.load %arg5[%c2_45] : memref<6xf32, #tpu.memory_space<smem>>
      %cst_46 = arith.constant 9.99999974E-6 : f32
      %86 = arith.addf %84, %cst_46 : f32
      %87 = math.rsqrt %86 : f32
      %88 = arith.mulf %85, %87 : f32
      %c2_47 = arith.constant 2 : index
      %89 = memref.load %arg9[%c2_47] : memref<6xf32, #tpu.memory_space<smem>>
      memref.store %88, %arg9[%c2_47] : memref<6xf32, #tpu.memory_space<smem>>
      %c5 = arith.constant 5 : index
      %90 = memref.load %arg5[%c5] : memref<6xf32, #tpu.memory_space<smem>>
      %91 = arith.mulf %80, %88 : f32
      %92 = arith.subf %90, %91 : f32
      %c5_48 = arith.constant 5 : index
      %93 = memref.load %arg9[%c5_48] : memref<6xf32, #tpu.memory_space<smem>>
      memref.store %92, %arg9[%c5_48] : memref<6xf32, #tpu.memory_space<smem>>
    } else {
    }
    %c1_i32_6 = arith.constant 1 : i32
    %13 = arith.cmpi eq, %arg0, %c1_i32_6 : i32
    %14 = arith.extui %13 : i1 to i32
    %c0_i32_7 = arith.constant 0 : i32
    %15 = arith.cmpi ne, %14, %c0_i32_7 : i32
    scf.if %15 {
      %16 = arith.index_cast %arg1 : i32 to index
      %c0 = arith.constant 0 : index
      %c0_8 = arith.constant 0 : index
      %17 = vector.load %arg7[%16, %c0, %c0_8] : memref<2x3x256xf32, #tpu.memory_space<vmem>>, vector<1x3x256xf32>
      %18 = vector.shape_cast %17 : vector<1x3x256xf32> to vector<3x256xf32>
      %19 = vector.extract_strided_slice %18 {offsets = [0, 0], sizes = [1, 256], strides = [1, 1]} : vector<3x256xf32> to vector<1x256xf32>
      %c0_9 = arith.constant 0 : index
      %20 = memref.load %arg9[%c0_9] : memref<6xf32, #tpu.memory_space<smem>>
      %21 = vector.broadcast %20 : f32 to vector<1x256xf32>
      %22 = arith.mulf %19, %21 : vector<1x256xf32>
      %c3 = arith.constant 3 : index
      %23 = memref.load %arg9[%c3] : memref<6xf32, #tpu.memory_space<smem>>
      %24 = vector.broadcast %23 : f32 to vector<1x256xf32>
      %25 = arith.addf %22, %24 : vector<1x256xf32>
      %c0_10 = arith.constant 0 : index
      %c0_11 = arith.constant 0 : index
      %c0_12 = arith.constant 0 : index
      %26 = vector.load %arg6[%c0_10, %c0_11, %c0_12] : memref<1x3x256xf32, #tpu.memory_space<vmem>>, vector<1x1x256xf32>
      %27 = vector.shape_cast %26 : vector<1x1x256xf32> to vector<1x256xf32>
      %28 = vector.shape_cast %25 : vector<1x256xf32> to vector<1x1x256xf32>
      tpu.vector_store %arg6[%c0_10, %c0_11, %c0_12], %28 {strides = array<i32>} : memref<1x3x256xf32, #tpu.memory_space<vmem>>, vector<1x1x256xf32>,
      %29 = vector.extract_strided_slice %18 {offsets = [1, 0], sizes = [1, 256], strides = [1, 1]} : vector<3x256xf32> to vector<1x256xf32>
      %c1 = arith.constant 1 : index
      %30 = memref.load %arg9[%c1] : memref<6xf32, #tpu.memory_space<smem>>
      %31 = vector.broadcast %30 : f32 to vector<1x256xf32>
      %32 = arith.mulf %29, %31 : vector<1x256xf32>
      %c4 = arith.constant 4 : index
      %33 = memref.load %arg9[%c4] : memref<6xf32, #tpu.memory_space<smem>>
      %34 = vector.broadcast %33 : f32 to vector<1x256xf32>
      %35 = arith.addf %32, %34 : vector<1x256xf32>
      %c0_13 = arith.constant 0 : index
      %c1_14 = arith.constant 1 : index
      %c0_15 = arith.constant 0 : index
      %36 = vector.load %arg6[%c0_13, %c1_14, %c0_15] : memref<1x3x256xf32, #tpu.memory_space<vmem>>, vector<1x1x256xf32>
      %37 = vector.shape_cast %36 : vector<1x1x256xf32> to vector<1x256xf32>
      %38 = vector.shape_cast %35 : vector<1x256xf32> to vector<1x1x256xf32>
      tpu.vector_store %arg6[%c0_13, %c1_14, %c0_15], %38 {strides = array<i32>} : memref<1x3x256xf32, #tpu.memory_space<vmem>>, vector<1x1x256xf32>,
      %39 = vector.extract_strided_slice %18 {offsets = [2, 0], sizes = [1, 256], strides = [1, 1]} : vector<3x256xf32> to vector<1x256xf32>
      %c2 = arith.constant 2 : index
      %40 = memref.load %arg9[%c2] : memref<6xf32, #tpu.memory_space<smem>>
      %41 = vector.broadcast %40 : f32 to vector<1x256xf32>
      %42 = arith.mulf %39, %41 : vector<1x256xf32>
      %c5 = arith.constant 5 : index
      %43 = memref.load %arg9[%c5] : memref<6xf32, #tpu.memory_space<smem>>
      %44 = vector.broadcast %43 : f32 to vector<1x256xf32>
      %45 = arith.addf %42, %44 : vector<1x256xf32>
      %c0_16 = arith.constant 0 : index
      %c2_17 = arith.constant 2 : index
      %c0_18 = arith.constant 0 : index
      %46 = vector.load %arg6[%c0_16, %c2_17, %c0_18] : memref<1x3x256xf32, #tpu.memory_space<vmem>>, vector<1x1x256xf32>
      %47 = vector.shape_cast %46 : vector<1x1x256xf32> to vector<1x256xf32>
      %48 = vector.shape_cast %45 : vector<1x256xf32> to vector<1x1x256xf32>
      tpu.vector_store %arg6[%c0_16, %c2_17, %c0_18], %48 {strides = array<i32>} : memref<1x3x256xf32, #tpu.memory_space<vmem>>, vector<1x1x256xf32>,
    } else {
    }
    return
  }
  func.func @transform_0(%arg0: i32, %arg1: i32) -> (i32, i32, i32) {
    %c1_i32 = arith.constant 1 : i32
    %0 = arith.subi %c1_i32, %arg0 : i32
    %1 = arith.muli %0, %arg1 : i32
    %c0_i32 = arith.constant 0 : i32
    %c0_i32_0 = arith.constant 0 : i32
    %c0_i32_1 = arith.constant 0 : i32
    return %1, %c0_i32, %c0_i32_0 : i32, i32, i32
  }
  func.func @transform_1(%arg0: i32, %arg1: i32) -> (i32, i32) {
    %c0_i32 = arith.constant 0 : i32
    %c0_i32_0 = arith.constant 0 : i32
    %c0_i32_1 = arith.constant 0 : i32
    return %c0_i32, %c0_i32_0 : i32, i32
  }
  func.func @transform_2(%arg0: i32, %arg1: i32) -> i32 {
    %c0_i32 = arith.constant 0 : i32
    %c0_i32_0 = arith.constant 0 : i32
    return %c0_i32 : i32
  }
  func.func @transform_3(%arg0: i32, %arg1: i32) -> i32 {
    %c0_i32 = arith.constant 0 : i32
    %c0_i32_0 = arith.constant 0 : i32
    return %c0_i32 : i32
  }
  func.func @transform_4(%arg0: i32, %arg1: i32) -> (i32, i32, i32) {
    %0 = arith.muli %arg0, %arg1 : i32
    %c0_i32 = arith.constant 0 : i32
    %c0_i32_0 = arith.constant 0 : i32
    %c0_i32_1 = arith.constant 0 : i32
    return %0, %c0_i32, %c0_i32_0 : i32, i32, i32
  }
}

</mosaic_0001>

<llo_original>
// kernel: conv_bn_bias.1
$region0: #{conv_bn_bias.1}
  #allocation0 [shape = 'u32[]', space=smem, size = 0x4, offset = 0x4, fixed_abs, tag = 'smem constant byte address 0x4 - core index']
  #allocation1 [shape = 'u32[144,128]{1,0:T(1,128)}', space=vmem, size = 0x12000, scoped, tag = 'internal scratch']
  #allocation2 [shape = 'f32[2,3,256]{2,1,0:T(4,128)}', space=vmem, size = 0x2000, scoped, tag = 'scratch operand']
  #allocation3 [shape = 'f32[2,3,256]{2,1,0:T(4,128)}', space=vmem, size = 0x2000, scoped, tag = 'scratch operand']
  #allocation4 [shape = 'f32[6]{0:T(128)}', space=smem, size = 0x200, scoped, tag = 'scratch operand']
  %s0 = inlined_call_operand.vmem [shape: f32[2,3,256], index: 0, kind: input, shape index: {}]
  %s1 = inlined_call_operand.vmem [shape: f32[1,256], index: 1, kind: input, shape index: {}]
  %s2 = inlined_call_operand.vmem [shape: f32[81], index: 2, kind: input, shape index: {}]
  %s3 = inlined_call_operand.vmem [shape: f32[6], index: 3, kind: input, shape index: {}]
  %s4 = inlined_call_operand.vmem [shape: f32[2,3,256], index: 4, kind: output, shape index: {}]
  %s5 = sld [smem:[#allocation0]]
  $region73: #{conv_bn_bias.1} parent=0
    _
  %s7 = ssub.s32 1, %s5
  %s8 = scalar_select 0, %s7, %s5
  $region1: #{conv_bn_bias.1} parent=0
    #allocation5 [shape = 'u8[512]{0}', space=smem, size = 0x200, scoped, tag = 'input window, operand 2, single buffered']
    #allocation6 [shape = 's32[2]{0}', space=sflag, size = 0x8, scoped, tag = 'scoped memory for conv_bn_bias.1']
    #allocation7 [shape = 'u8[512]{0}', space=smem, size = 0x200, scoped, tag = 'input window, operand 3, single buffered']
    #allocation8 [shape = 's32[1]{0}', space=sflag, size = 0x4, scoped, tag = 'scoped memory for conv_bn_bias.1']
    %9 = vsyncpa [#allocation6], 0
    %10 = vsyncpa [#allocation8], 0
    loop: start=0, step=1, limit=6
    $region2: #{conv_bn_bias.1} parent=1 // loop_pre_header
      _
    $region3: #{conv_bn_bias.1} parent=1 // loop_header
      %s12 = sphi 0, %s16
      %p13 = scmp.ge.s32.totalorder %s12, 6
      %s19 = sphi 0, %s31
      %s20 = sphi 0, %s27
      %s21 = sphi 0, %s19
      %s22 = sphi 0, %s20
      %s23 = sphi 0, %s21
      %s24 = sphi 0, %s22
      %s38 = sphi 0, %s40
      %s41 = sphi 0, %s38
      %s42 = sphi 0, %s41
      %s58 = sphi 0, %s42
      %s62 = sphi 0, %s62
      %s64 = sphi 0, %s62
      %s65 = sphi 0, %s64
      %s79 = sphi 0, %s65
      %s83 = sphi 0, %s83
      %s85 = sphi 0, %s83
      %s86 = sphi 0, %s85
      %s100 = sphi 0, %s86
      %s104 = sphi 0, %s104
      %s106 = sphi 0, %s104
      %s107 = sphi 0, %s106
      %s121 = sphi 0, %s107
      %s129 = sphi 0, %s131
      %s132 = sphi 0, %s129
      %s133 = sphi 0, %s132
      %s149 = sphi 0, %s133
    $region4: #{conv_bn_bias.1} parent=1 // loop_header_branch
      %15 = sbr.rel (%p13) target = $region8
    $region5: #{conv_bn_bias.1} parent=1 // loop_body
      %s17 = ssub.s32 %s12, 1
      %s18 = ssub.s32 %s12, 2
      %s25 = sadd.s32 1, %s20
      %p26 = scmp.ge.s32.totalorder %s25, 2
      %s27 = scalar_select %p26, 0, %s25
      %s28 = sadd.s32 1, %s19
      %s29 = scalar_select %p26, %s28, %s19
      %p30 = scmp.ge.s32.totalorder %s29, 2
      %s31 = scalar_select %p30, 0, %s29
      %s32 = ssub.s32 1, %s19
      %s33 = smul.u32 %s32, %s20
      %s34 = ssub.s32 1, %s31
      %s35 = smul.u32 %s34, %s27
      %s36 = ssub.s32 %s33, %s35
      %p37 = scmp.eq.s32.totalorder %s36, 0
      %s39 = sadd.s32 %s38, 1
      %s40 = scalar_select %p37, %s38, %s39
      %p43 = pneg %p37
      %p44 = scmp.eq.s32.totalorder %s12, 3
      %p45 = por %p43, %p44
      %p46 = scmp.ne.s32.totalorder %s38, %s41
      %p47 = scmp.eq.s32.totalorder %s12, 0
      %p48 = por %p46, %p47
      %p49 = scmp.ne.s32.totalorder %s38, %s41
      %p50 = scmp.eq.s32.totalorder %s17, 3
      %p51 = por %p49, %p50
      %p52 = scmp.ne.s32.totalorder %s41, %s42
      %p53 = scmp.eq.s32.totalorder %s17, 0
      %p54 = por %p52, %p53
      %p55 = scmp.ne.s32.totalorder %s41, %s42
      %p56 = scmp.eq.s32.totalorder %s18, 3
      %p57 = por %p55, %p56
      %p59 = scmp.ne.s32.totalorder %s42, %s58
      %p60 = scmp.eq.s32.totalorder %s18, 0
      %p61 = por %p59, %p60
      %s63 = sadd.s32 %s62, 1
      %p66 = scmp.eq.s32.totalorder %s12, 3
      %p67 = scmp.ne.s32.totalorder %s62, %s64
      %p68 = scmp.eq.s32.totalorder %s12, 0
      %p69 = por %p67, %p68
      %p70 = scmp.ne.s32.totalorder %s62, %s64
      %p71 = scmp.eq.s32.totalorder %s17, 3
      %p72 = por %p70, %p71
      %p73 = scmp.ne.s32.totalorder %s64, %s65
      %p74 = scmp.eq.s32.totalorder %s17, 0
      %p75 = por %p73, %p74
      %p76 = scmp.ne.s32.totalorder %s64, %s65
      %p77 = scmp.eq.s32.totalorder %s18, 3
      %p78 = por %p76, %p77
      %p80 = scmp.ne.s32.totalorder %s65, %s79
      %p81 = scmp.eq.s32.totalorder %s18, 0
      %p82 = por %p80, %p81
      %s84 = sadd.s32 %s83, 1
      %p87 = scmp.eq.s32.totalorder %s12, 3
      %p88 = scmp.ne.s32.totalorder %s83, %s85
      %p89 = scmp.eq.s32.totalorder %s12, 0
      %p90 = por %p88, %p89
      %p91 = scmp.ne.s32.totalorder %s83, %s85
      %p92 = scmp.eq.s32.totalorder %s17, 3
      %p93 = por %p91, %p92
      %p94 = scmp.ne.s32.totalorder %s85, %s86
      %p95 = scmp.eq.s32.totalorder %s17, 0
      %p96 = por %p94, %p95
      %p97 = scmp.ne.s32.totalorder %s85, %s86
      %p98 = scmp.eq.s32.totalorder %s18, 3
      %p99 = por %p97, %p98
      %p101 = scmp.ne.s32.totalorder %s86, %s100
      %p102 = scmp.eq.s32.totalorder %s18, 0
      %p103 = por %p101, %p102
      %s105 = sadd.s32 %s104, 1
      %p108 = scmp.eq.s32.totalorder %s12, 3
      %p109 = scmp.ne.s32.totalorder %s104, %s106
      %p110 = scmp.eq.s32.totalorder %s12, 0
      %p111 = por %p109, %p110
      %p112 = scmp.ne.s32.totalorder %s104, %s106
      %p113 = scmp.eq.s32.totalorder %s17, 3
      %p114 = por %p112, %p113
      %p115 = scmp.ne.s32.totalorder %s106, %s107
      %p116 = scmp.eq.s32.totalorder %s17, 0
      %p117 = por %p115, %p116
      %p118 = scmp.ne.s32.totalorder %s106, %s107
      %p119 = scmp.eq.s32.totalorder %s18, 3
      %p120 = por %p118, %p119
      %p122 = scmp.ne.s32.totalorder %s107, %s121
      %p123 = scmp.eq.s32.totalorder %s18, 0
      %p124 = por %p122, %p123
      %s125 = smul.u32 %s19, %s20
      %s126 = smul.u32 %s31, %s27
      %s127 = ssub.s32 %s125, %s126
      %p128 = scmp.eq.s32.totalorder %s127, 0
      %s130 = sadd.s32 %s129, 1
      %s131 = scalar_select %p128, %s129, %s130
      %p134 = pneg %p128
      %p135 = scmp.eq.s32.totalorder %s12, 3
      %p136 = por %p134, %p135
      %p137 = scmp.ne.s32.totalorder %s129, %s132
      %p138 = scmp.eq.s32.totalorder %s12, 0
      %p139 = por %p137, %p138
      %p140 = scmp.ne.s32.totalorder %s129, %s132
      %p141 = scmp.eq.s32.totalorder %s17, 3
      %p142 = por %p140, %p141
      %p143 = scmp.ne.s32.totalorder %s132, %s133
      %p144 = scmp.eq.s32.totalorder %s17, 0
      %p145 = por %p143, %p144
      %p146 = scmp.ne.s32.totalorder %s132, %s133
      %p147 = scmp.eq.s32.totalorder %s18, 3
      %p148 = por %p146, %p147
      %p150 = scmp.ne.s32.totalorder %s133, %s149
      %p151 = scmp.eq.s32.totalorder %s18, 0
      %p152 = por %p150, %p151
      %p153 = scmp.le.s32.totalorder 1, %s12
      %p154 = scmp.lt.s32.totalorder %s12, 5
      %p155 = pnand %p153, %p154
      %p156 = pneg %p155
      // Predicated region
      $region9: #{conv_bn_bias.1} parent=5 // pred_check
        _
      $region10: #{conv_bn_bias.1} parent=5 // pred_check_branch
        %158 = sbr.rel (%p155) target = $region12
      $region11: #{conv_bn_bias.1} parent=5 // pred_region
        %s159 = ssub.s32 %s12, 1
        // Predicated region
        $region13: #{conv_bn_bias.1} parent=11 // pred_check
          %p160 = pneg %p75
        $region14: #{conv_bn_bias.1} parent=11 // pred_check_branch
          %162 = sbr.rel (%p160) target = $region16
        $region15: #{conv_bn_bias.1} parent=11 // pred_region
          _
        $region16: #{conv_bn_bias.1} parent=11 // pred_fallthru
          _
        // Predicated region
        $region17: #{conv_bn_bias.1} parent=11 // pred_check
          %p163 = pneg %p96
        $region18: #{conv_bn_bias.1} parent=11 // pred_check_branch
          %165 = sbr.rel (%p163) target = $region20
        $region19: #{conv_bn_bias.1} parent=11 // pred_region
          %s167 = ssub.s32 16, 16
          %168 = vsyncadd [#allocation6], %s167
          %s170 = sshll.u32 %s2, 4
          %s171 = int_to_ptr.vmem [resolvable:$true] %s170
          %173 = dma.vmem_to_smem %s171, 16, [#allocation5], [#allocation6]
        $region20: #{conv_bn_bias.1} parent=11 // pred_fallthru
          _
        // Predicated region
        $region21: #{conv_bn_bias.1} parent=11 // pred_check
          %p174 = pneg %p117
        $region22: #{conv_bn_bias.1} parent=11 // pred_check_branch
          %176 = sbr.rel (%p174) target = $region24
        $region23: #{conv_bn_bias.1} parent=11 // pred_region
          %s178 = ssub.s32 16, 16
          %179 = vsyncadd [#allocation8], %s178
          %s181 = sshll.u32 %s3, 4
          %s182 = int_to_ptr.vmem [resolvable:$true] %s181
          %184 = dma.vmem_to_smem %s182, 16, [#allocation7], [#allocation8]
        $region24: #{conv_bn_bias.1} parent=11 // pred_fallthru
          _
      $region12: #{conv_bn_bias.1} parent=5 // pred_fallthru
        _
      %p185 = scmp.lt.s32.totalorder %s12, 4
      // Predicated region
      $region25: #{conv_bn_bias.1} parent=5 // pred_check
        %p186 = pneg %p185
      $region26: #{conv_bn_bias.1} parent=5 // pred_check_branch
        %188 = sbr.rel (%p186) target = $region28
      $region27: #{conv_bn_bias.1} parent=5 // pred_region
        // Predicated region
        $region29: #{conv_bn_bias.1} parent=27 // pred_check
          %p189 = pneg %p48
        $region30: #{conv_bn_bias.1} parent=27 // pred_check_branch
          %191 = sbr.rel (%p189) target = $region32
        $region31: #{conv_bn_bias.1} parent=27 // pred_region
          %s192 = ssub.s32 1, %s19
          %s193 = smul.u32 %s192, %s20
          %p194 = scmp.lt.s32.totalorder %s193, 1
          %s195 = scalar_select %p194, %s193, 1
          %s196 = smul.addr %s195, 2
          %s197 = smul.addr %s196, 4
          %s198 = scalar_lea.vmem %s0, %s197
          %s199 = ssub.s32 1, %s19
          %s200 = smul.u32 %s199, %s20
        $region32: #{conv_bn_bias.1} parent=27 // pred_fallthru
          _
      $region28: #{conv_bn_bias.1} parent=5 // pred_fallthru
        _
      %p201 = scmp.le.s32.totalorder 1, %s12
      %p202 = scmp.lt.s32.totalorder %s12, 5
      %p203 = pnand %p201, %p202
      %p204 = pneg %p203
      // Predicated region
      $region33: #{conv_bn_bias.1} parent=5 // pred_check
        _
      $region34: #{conv_bn_bias.1} parent=5 // pred_check_branch
        %206 = sbr.rel (%p203) target = $region36
      $region35: #{conv_bn_bias.1} parent=5 // pred_region
        %s207 = ssub.s32 %s12, 1
        // Predicated region
        $region37: #{conv_bn_bias.1} parent=35 // pred_check
          %p208 = pneg %p96
        $region38: #{conv_bn_bias.1} parent=35 // pred_check_branch
          %210 = sbr.rel (%p208) target = $region40
        $region39: #{conv_bn_bias.1} parent=35 // pred_region
          %211 = dma.done [#allocation6], 16
        $region40: #{conv_bn_bias.1} parent=35 // pred_fallthru
          _
        // Predicated region
        $region41: #{conv_bn_bias.1} parent=35 // pred_check
          %p212 = pneg %p117
        $region42: #{conv_bn_bias.1} parent=35 // pred_check_branch
          %214 = sbr.rel (%p212) target = $region44
        $region43: #{conv_bn_bias.1} parent=35 // pred_region
          %215 = dma.done [#allocation8], 16
        $region44: #{conv_bn_bias.1} parent=35 // pred_fallthru
          _
        %216 = sfence
        %s217 = ssub.s32 1, %s21
        %s218 = smul.u32 %s217, %s22
        %p219 = scmp.lt.s32.totalorder %s218, 1
        %s220 = scalar_select %p219, %s218, 1
        %s221 = smul.addr %s220, 2
        %s222 = smul.addr %s221, 4
        %s223 = scalar_lea.vmem %s0, %s222
        %p224 = pneg %p54
        %p225 = pneg %p51
        %p226 = pneg %p75
        %p227 = pneg %p72
        %p228 = pneg %p96
        %p229 = pneg %p93
        %p230 = pneg %p117
        %p231 = pneg %p114
        %p232 = pneg %p145
        %p233 = pneg %p142
        %s234 = smul.u32 %s21, %s22
        %p235 = scmp.lt.s32.totalorder %s234, 1
        %s236 = scalar_select %p235, %s234, 1
        %s237 = smul.addr %s236, 2
        %s238 = smul.addr %s237, 4
        %s239 = scalar_lea.vmem %s4, %s238
        %s240 = ssub.s32 1, %s21
        %s241 = smul.u32 %s240, %s22
        %p242 = scmp.lt.s32.totalorder %s241, 1
        %s243 = scalar_select %p242, %s241, 1
        %s244 = smul.addr %s243, 2
        %s245 = smul.addr %s244, 4
        %s246 = scalar_lea.vmem %s0, %s245
        %s247 = ssub.s32 1, %s21
        %s248 = smul.u32 %s247, %s22
        %s249 = smul.u32 %s21, %s22
        %p250 = scmp.lt.s32.totalorder %s249, 1
        %s251 = scalar_select %p250, %s249, 1
        %s252 = smul.addr %s251, 2
        %s253 = smul.addr %s252, 4
        %s254 = scalar_lea.vmem %s4, %s253
        %s255 = smul.u32 %s21, %s22
        %p256 = scmp.eq.s32.totalorder %s21, 0
        %p257 = scmp.eq.s32.totalorder %s22, 0
        %p258 = pnand %p256, %p257
        %p259 = pneg %p258
        // Predicated region
        $region45: #{conv_bn_bias.1} parent=35 // pred_check
          _
        $region46: #{conv_bn_bias.1} parent=35 // pred_check_branch
          %261 = sbr.rel (%p258) target = $region48
        $region47: #{conv_bn_bias.1} parent=35 // pred_region
          %262 = vst [vmem:[#allocation3] sm:$0x77] 0.0
          %263 = vst [vmem:[#allocation3 + $0x8] sm:$0x77] 0.0
        $region48: #{conv_bn_bias.1} parent=35 // pred_fallthru
          _
        // Predicated region
        $region49: #{conv_bn_bias.1} parent=35 // pred_check
          %p264 = pneg %p256
        $region50: #{conv_bn_bias.1} parent=35 // pred_check_branch
          %266 = sbr.rel (%p264) target = $region52
        $region51: #{conv_bn_bias.1} parent=35 // pred_region
          %v267 = vld [vmem:[%s246] sm:$0x77]
          %v268 = vld [vmem:[%s1] sm:$0x3]
          %s269 = sld [smem:[#allocation5]]
          %v270 = vstv %s269
          %v271 = vmul.f32 %v270, %v267
          %s272 = sld [smem:[#allocation5 + $0x1b]]
          %v273 = vstv %s272
          %v274 = vmul.f32 %v273, %v267
          %s275 = sld [smem:[#allocation5 + $0x36]]
          %v276 = vstv %s275
          %v277 = vmul.f32 %v276, %v267
          %s278 = sld [smem:[#allocation5 + $0x9]]
          %v279 = vstv %s278
          %v280 = vmul.f32 %v279, %v267
          %v282 = vrot.slane %v280, 5
          %v283 = vrot.slane %v282, 4
          %v285 = vadd.f32 %v271, %v283
          %s286 = sld [smem:[#allocation5 + $0x24]]
          %v287 = vstv %s286
          %v288 = vmul.f32 %v287, %v267
          %v290 = vrot.slane %v288, 5
          %v291 = vrot.slane %v290, 4
          %v293 = vadd.f32 %v274, %v291
          %s294 = sld [smem:[#allocation5 + $0x3f]]
          %v295 = vstv %s294
          %v296 = vmul.f32 %v295, %v267
          %v298 = vrot.slane %v296, 5
          %v299 = vrot.slane %v298, 4
          %v301 = vadd.f32 %v277, %v299
          %s302 = sld [smem:[#allocation5 + $0x12]]
          %v303 = vstv %s302
          %v304 = vmul.f32 %v303, %v267
          %v306 = vrot.slane %v304, 6
          %v307 = vrot.slane %v306, 4
          %v309 = vadd.f32 %v285, %v307
          %s310 = sld [smem:[#allocation5 + $0x2d]]
          %v311 = vstv %s310
          %v312 = vmul.f32 %v311, %v267
          %v314 = vrot.slane %v312, 6
          %v315 = vrot.slane %v314, 4
          %v317 = vadd.f32 %v293, %v315
          %s318 = sld [smem:[#allocation5 + $0x48]]
          %v319 = vstv %s318
          %v320 = vmul.f32 %v319, %v267
          %v322 = vrot.slane %v320, 6
          %v323 = vrot.slane %v322, 4
          %v325 = vadd.f32 %v301, %v323
          %v327 = vcombine.high %v267, %v267
          %329 = vrot.lane.b32.xlu0 %v267, 127
          %v330 = vpop.permute.xlu0 %329
          %331 = vrot.lane.b32.xlu0 %v327, 127
          %v332 = vpop.permute.xlu0 %331
          %v333 = vlaneseq
          %v334 = vand.u32 %v333, 127
          %vm335 = vcmp.lt.s32.totalorder %v334, 127
          %v336 = vsel %vm335, %v330, %v332
          %v337 = vsel %vm335, %v332, %v330
          %s338 = sld [smem:[#allocation5 + $0x1]]
          %v339 = vstv %s338
          %v340 = vmul.f32 %v339, %v336
          %v341 = vmul.f32 %v339, %v337
          %v344 = vcombine.low %v340, %v341
          %v346 = vadd.f32 %v309, %v344
          %s347 = sld [smem:[#allocation5 + $0x1c]]
          %v348 = vstv %s347
          %v349 = vmul.f32 %v348, %v336
          %v350 = vmul.f32 %v348, %v337
          %v353 = vcombine.low %v349, %v350
          %v355 = vadd.f32 %v317, %v353
          %s356 = sld [smem:[#allocation5 + $0x37]]
          %v357 = vstv %s356
          %v358 = vmul.f32 %v357, %v336
          %v359 = vmul.f32 %v357, %v337
          %v362 = vcombine.low %v358, %v359
          %v364 = vadd.f32 %v325, %v362
          %s365 = sld [smem:[#allocation5 + $0xa]]
          %v366 = vstv %s365
          %v367 = vmul.f32 %v366, %v336
          %v368 = vmul.f32 %v366, %v337
          %v371 = vcombine.low %v367, %v368
          %v372 = vrot.slane %v371, 5
          %v373 = vrot.slane %v372, 4
          %v375 = vadd.f32 %v346, %v373
          %s376 = sld [smem:[#allocation5 + $0x25]]
          %v377 = vstv %s376
          %v378 = vmul.f32 %v377, %v336
          %v379 = vmul.f32 %v377, %v337
          %v382 = vcombine.low %v378, %v379
          %v383 = vrot.slane %v382, 5
          %v384 = vrot.slane %v383, 4
          %v386 = vadd.f32 %v355, %v384
          %s387 = sld [smem:[#allocation5 + $0x40]]
          %v388 = vstv %s387
          %v389 = vmul.f32 %v388, %v336
          %v390 = vmul.f32 %v388, %v337
          %v393 = vcombine.low %v389, %v390
          %v394 = vrot.slane %v393, 5
          %v395 = vrot.slane %v394, 4
          %v397 = vadd.f32 %v364, %v395
          %s398 = sld [smem:[#allocation5 + $0x13]]
          %v399 = vstv %s398
          %v400 = vmul.f32 %v399, %v336
          %v401 = vmul.f32 %v399, %v337
          %v404 = vcombine.low %v400, %v401
          %v405 = vrot.slane %v404, 6
          %v406 = vrot.slane %v405, 4
          %v408 = vadd.f32 %v375, %v406
          %s409 = sld [smem:[#allocation5 + $0x2e]]
          %v410 = vstv %s409
          %v411 = vmul.f32 %v410, %v336
          %v412 = vmul.f32 %v410, %v337
          %v415 = vcombine.low %v411, %v412
          %v416 = vrot.slane %v415, 6
          %v417 = vrot.slane %v416, 4
          %v419 = vadd.f32 %v386, %v417
          %s420 = sld [smem:[#allocation5 + $0x49]]
          %v421 = vstv %s420
          %v422 = vmul.f32 %v421, %v336
          %v423 = vmul.f32 %v421, %v337
          %v426 = vcombine.low %v422, %v423
          %v427 = vrot.slane %v426, 6
          %v428 = vrot.slane %v427, 4
          %v430 = vadd.f32 %v397, %v428
          %431 = vrot.lane.b32.xlu0 %v267, 126
          %v432 = vpop.permute.xlu0 %431
          %433 = vrot.lane.b32.xlu0 %v327, 126
          %v434 = vpop.permute.xlu0 %433
          %vm435 = vcmp.lt.s32.totalorder %v334, 126
          %v436 = vsel %vm435, %v432, %v434
          %v437 = vsel %vm435, %v434, %v432
          %s438 = sld [smem:[#allocation5 + $0x2]]
          %v439 = vstv %s438
          %v440 = vmul.f32 %v439, %v436
          %v441 = vmul.f32 %v439, %v437
          %v444 = vcombine.low %v440, %v441
          %v446 = vadd.f32 %v408, %v444
          %s447 = sld [smem:[#allocation5 + $0x1d]]
          %v448 = vstv %s447
          %v449 = vmul.f32 %v448, %v436
          %v450 = vmul.f32 %v448, %v437
          %v453 = vcombine.low %v449, %v450
          %v455 = vadd.f32 %v419, %v453
          %s456 = sld [smem:[#allocation5 + $0x38]]
          %v457 = vstv %s456
          %v458 = vmul.f32 %v457, %v436
          %v459 = vmul.f32 %v457, %v437
          %v462 = vcombine.low %v458, %v459
          %v464 = vadd.f32 %v430, %v462
          %s465 = sld [smem:[#allocation5 + $0xb]]
          %v466 = vstv %s465
          %v467 = vmul.f32 %v466, %v436
          %v468 = vmul.f32 %v466, %v437
          %v471 = vcombine.low %v467, %v468
          %v472 = vrot.slane %v471, 5
          %v473 = vrot.slane %v472, 4
          %v475 = vadd.f32 %v446, %v473
          %s476 = sld [smem:[#allocation5 + $0x26]]
          %v477 = vstv %s476
          %v478 = vmul.f32 %v477, %v436
          %v479 = vmul.f32 %v477, %v437
          %v482 = vcombine.low %v478, %v479
          %v483 = vrot.slane %v482, 5
          %v484 = vrot.slane %v483, 4
          %v486 = vadd.f32 %v455, %v484
          %s487 = sld [smem:[#allocation5 + $0x41]]
          %v488 = vstv %s487
          %v489 = vmul.f32 %v488, %v436
          %v490 = vmul.f32 %v488, %v437
          %v493 = vcombine.low %v489, %v490
          %v494 = vrot.slane %v493, 5
          %v495 = vrot.slane %v494, 4
          %v497 = vadd.f32 %v464, %v495
          %s498 = sld [smem:[#allocation5 + $0x14]]
          %v499 = vstv %s498
          %v500 = vmul.f32 %v499, %v436
          %v501 = vmul.f32 %v499, %v437
          %v504 = vcombine.low %v500, %v501
          %v505 = vrot.slane %v504, 6
          %v506 = vrot.slane %v505, 4
          %v508 = vadd.f32 %v475, %v506
          %s509 = sld [smem:[#allocation5 + $0x2f]]
          %v510 = vstv %s509
          %v511 = vmul.f32 %v510, %v436
          %v512 = vmul.f32 %v510, %v437
          %v515 = vcombine.low %v511, %v512
          %v516 = vrot.slane %v515, 6
          %v517 = vrot.slane %v516, 4
          %v519 = vadd.f32 %v486, %v517
          %s520 = sld [smem:[#allocation5 + $0x4a]]
          %v521 = vstv %s520
          %v522 = vmul.f32 %v521, %v436
          %v523 = vmul.f32 %v521, %v437
          %v526 = vcombine.low %v522, %v523
          %v527 = vrot.slane %v526, 6
          %v528 = vrot.slane %v527, 4
          %v530 = vadd.f32 %v497, %v528
          %531 = vrot.lane.b32.xlu0 %v267, 112
          %v532 = vpop.permute.xlu0 %531
          %533 = vrot.lane.b32.xlu0 %v327, 112
          %v534 = vpop.permute.xlu0 %533
          %vm535 = vcmp.lt.s32.totalorder %v334, 112
          %v536 = vsel %vm535, %v532, %v534
          %v537 = vsel %vm535, %v534, %v532
          %s538 = sld [smem:[#allocation5 + $0x3]]
          %v539 = vstv %s538
          %v540 = vmul.f32 %v539, %v536
          %v541 = vmul.f32 %v539, %v537
          %v544 = vcombine.low %v540, %v541
          %v546 = vadd.f32 %v508, %v544
          %s547 = sld [smem:[#allocation5 + $0x1e]]
          %v548 = vstv %s547
          %v549 = vmul.f32 %v548, %v536
          %v550 = vmul.f32 %v548, %v537
          %v553 = vcombine.low %v549, %v550
          %v555 = vadd.f32 %v519, %v553
          %s556 = sld [smem:[#allocation5 + $0x39]]
          %v557 = vstv %s556
          %v558 = vmul.f32 %v557, %v536
          %v559 = vmul.f32 %v557, %v537
          %v562 = vcombine.low %v558, %v559
          %v564 = vadd.f32 %v530, %v562
          %s565 = sld [smem:[#allocation5 + $0xc]]
          %v566 = vstv %s565
          %v567 = vmul.f32 %v566, %v536
          %v568 = vmul.f32 %v566, %v537
          %v571 = vcombine.low %v567, %v568
          %v572 = vrot.slane %v571, 5
          %v573 = vrot.slane %v572, 4
          %v575 = vadd.f32 %v546, %v573
          %s576 = sld [smem:[#allocation5 + $0x27]]
          %v577 = vstv %s576
          %v578 = vmul.f32 %v577, %v536
          %v579 = vmul.f32 %v577, %v537
          %v582 = vcombine.low %v578, %v579
          %v583 = vrot.slane %v582, 5
          %v584 = vrot.slane %v583, 4
          %v586 = vadd.f32 %v555, %v584
          %s587 = sld [smem:[#allocation5 + $0x42]]
          %v588 = vstv %s587
          %v589 = vmul.f32 %v588, %v536
          %v590 = vmul.f32 %v588, %v537
          %v593 = vcombine.low %v589, %v590
          %v594 = vrot.slane %v593, 5
          %v595 = vrot.slane %v594, 4
          %v597 = vadd.f32 %v564, %v595
          %s598 = sld [smem:[#allocation5 + $0x15]]
          %v599 = vstv %s598
          %v600 = vmul.f32 %v599, %v536
          %v601 = vmul.f32 %v599, %v537
          %v604 = vcombine.low %v600, %v601
          %v605 = vrot.slane %v604, 6
          %v606 = vrot.slane %v605, 4
          %v608 = vadd.f32 %v575, %v606
          %s609 = sld [smem:[#allocation5 + $0x30]]
          %v610 = vstv %s609
          %v611 = vmul.f32 %v610, %v536
          %v612 = vmul.f32 %v610, %v537
          %v615 = vcombine.low %v611, %v612
          %v616 = vrot.slane %v615, 6
          %v617 = vrot.slane %v616, 4
          %v619 = vadd.f32 %v586, %v617
          %s620 = sld [smem:[#allocation5 + $0x4b]]
          %v621 = vstv %s620
          %v622 = vmul.f32 %v621, %v536
          %v623 = vmul.f32 %v621, %v537
          %v626 = vcombine.low %v622, %v623
          %v627 = vrot.slane %v626, 6
          %v628 = vrot.slane %v627, 4
          %v630 = vadd.f32 %v597, %v628
          %631 = vrot.lane.b32.xlu0 %v267, 111
          %v632 = vpop.permute.xlu0 %631
          %633 = vrot.lane.b32.xlu0 %v327, 111
          %v634 = vpop.permute.xlu0 %633
          %vm635 = vcmp.lt.s32.totalorder %v334, 111
          %v636 = vsel %vm635, %v632, %v634
          %v637 = vsel %vm635, %v634, %v632
          %s638 = sld [smem:[#allocation5 + $0x4]]
          %v639 = vstv %s638
          %v640 = vmul.f32 %v639, %v636
          %v641 = vmul.f32 %v639, %v637
          %v644 = vcombine.low %v640, %v641
          %v646 = vadd.f32 %v608, %v644
          %s647 = sld [smem:[#allocation5 + $0x1f]]
          %v648 = vstv %s647
          %v649 = vmul.f32 %v648, %v636
          %v650 = vmul.f32 %v648, %v637
          %v653 = vcombine.low %v649, %v650
          %v655 = vadd.f32 %v619, %v653
          %s656 = sld [smem:[#allocation5 + $0x3a]]
          %v657 = vstv %s656
          %v658 = vmul.f32 %v657, %v636
          %v659 = vmul.f32 %v657, %v637
          %v662 = vcombine.low %v658, %v659
          %v664 = vadd.f32 %v630, %v662
          %s665 = sld [smem:[#allocation5 + $0xd]]
          %v666 = vstv %s665
          %v667 = vmul.f32 %v666, %v636
          %v668 = vmul.f32 %v666, %v637
          %v671 = vcombine.low %v667, %v668
          %v672 = vrot.slane %v671, 5
          %v673 = vrot.slane %v672, 4
          %v675 = vadd.f32 %v646, %v673
          %s676 = sld [smem:[#allocation5 + $0x28]]
          %v677 = vstv %s676
          %v678 = vmul.f32 %v677, %v636
          %v679 = vmul.f32 %v677, %v637
          %v682 = vcombine.low %v678, %v679
          %v683 = vrot.slane %v682, 5
          %v684 = vrot.slane %v683, 4
          %v686 = vadd.f32 %v655, %v684
          %s687 = sld [smem:[#allocation5 + $0x43]]
          %v688 = vstv %s687
          %v689 = vmul.f32 %v688, %v636
          %v690 = vmul.f32 %v688, %v637
          %v693 = vcombine.low %v689, %v690
          %v694 = vrot.slane %v693, 5
          %v695 = vrot.slane %v694, 4
          %v697 = vadd.f32 %v664, %v695
          %s698 = sld [smem:[#allocation5 + $0x16]]
          %v699 = vstv %s698
          %v700 = vmul.f32 %v699, %v636
          %v701 = vmul.f32 %v699, %v637
          %v704 = vcombine.low %v700, %v701
          %v705 = vrot.slane %v704, 6
          %v706 = vrot.slane %v705, 4
          %v708 = vadd.f32 %v675, %v706
          %s709 = sld [smem:[#allocation5 + $0x31]]
          %v710 = vstv %s709
          %v711 = vmul.f32 %v710, %v636
          %v712 = vmul.f32 %v710, %v637
          %v715 = vcombine.low %v711, %v712
          %v716 = vrot.slane %v715, 6
          %v717 = vrot.slane %v716, 4
          %v719 = vadd.f32 %v686, %v717
          %s720 = sld [smem:[#allocation5 + $0x4c]]
          %v721 = vstv %s720
          %v722 = vmul.f32 %v721, %v636
          %v723 = vmul.f32 %v721, %v637
          %v726 = vcombine.low %v722, %v723
          %v727 = vrot.slane %v726, 6
          %v728 = vrot.slane %v727, 4
          %v730 = vadd.f32 %v697, %v728
          %731 = vrot.lane.b32.xlu0 %v267, 110
          %v732 = vpop.permute.xlu0 %731
          %733 = vrot.lane.b32.xlu0 %v327, 110
          %v734 = vpop.permute.xlu0 %733
          %vm735 = vcmp.lt.s32.totalorder %v334, 110
          %v736 = vsel %vm735, %v732, %v734
          %v737 = vsel %vm735, %v734, %v732
          %s738 = sld [smem:[#allocation5 + $0x5]]
          %v739 = vstv %s738
          %v740 = vmul.f32 %v739, %v736
          %v741 = vmul.f32 %v739, %v737
          %v744 = vcombine.low %v740, %v741
          %v746 = vadd.f32 %v708, %v744
          %s747 = sld [smem:[#allocation5 + $0x20]]
          %v748 = vstv %s747
          %v749 = vmul.f32 %v748, %v736
          %v750 = vmul.f32 %v748, %v737
          %v753 = vcombine.low %v749, %v750
          %v755 = vadd.f32 %v719, %v753
          %s756 = sld [smem:[#allocation5 + $0x3b]]
          %v757 = vstv %s756
          %v758 = vmul.f32 %v757, %v736
          %v759 = vmul.f32 %v757, %v737
          %v762 = vcombine.low %v758, %v759
          %v764 = vadd.f32 %v730, %v762
          %s765 = sld [smem:[#allocation5 + $0xe]]
          %v766 = vstv %s765
          %v767 = vmul.f32 %v766, %v736
          %v768 = vmul.f32 %v766, %v737
          %v771 = vcombine.low %v767, %v768
          %v772 = vrot.slane %v771, 5
          %v773 = vrot.slane %v772, 4
          %v775 = vadd.f32 %v746, %v773
          %s776 = sld [smem:[#allocation5 + $0x29]]
          %v777 = vstv %s776
          %v778 = vmul.f32 %v777, %v736
          %v779 = vmul.f32 %v777, %v737
          %v782 = vcombine.low %v778, %v779
          %v783 = vrot.slane %v782, 5
          %v784 = vrot.slane %v783, 4
          %v786 = vadd.f32 %v755, %v784
          %s787 = sld [smem:[#allocation5 + $0x44]]
          %v788 = vstv %s787
          %v789 = vmul.f32 %v788, %v736
          %v790 = vmul.f32 %v788, %v737
          %v793 = vcombine.low %v789, %v790
          %v794 = vrot.slane %v793, 5
          %v795 = vrot.slane %v794, 4
          %v797 = vadd.f32 %v764, %v795
          %s798 = sld [smem:[#allocation5 + $0x17]]
          %v799 = vstv %s798
          %v800 = vmul.f32 %v799, %v736
          %v801 = vmul.f32 %v799, %v737
          %v804 = vcombine.low %v800, %v801
          %v805 = vrot.slane %v804, 6
          %v806 = vrot.slane %v805, 4
          %v808 = vadd.f32 %v775, %v806
          %s809 = sld [smem:[#allocation5 + $0x32]]
          %v810 = vstv %s809
          %v811 = vmul.f32 %v810, %v736
          %v812 = vmul.f32 %v810, %v737
          %v815 = vcombine.low %v811, %v812
          %v816 = vrot.slane %v815, 6
          %v817 = vrot.slane %v816, 4
          %v819 = vadd.f32 %v786, %v817
          %s820 = sld [smem:[#allocation5 + $0x4d]]
          %v821 = vstv %s820
          %v822 = vmul.f32 %v821, %v736
          %v823 = vmul.f32 %v821, %v737
          %v826 = vcombine.low %v822, %v823
          %v827 = vrot.slane %v826, 6
          %v828 = vrot.slane %v827, 4
          %v830 = vadd.f32 %v797, %v828
          %831 = vrot.lane.b32.xlu0 %v267, 96
          %v832 = vpop.permute.xlu0 %831
          %833 = vrot.lane.b32.xlu0 %v327, 96
          %v834 = vpop.permute.xlu0 %833
          %vm835 = vcmp.lt.s32.totalorder %v334, 96
          %v836 = vsel %vm835, %v832, %v834
          %v837 = vsel %vm835, %v834, %v832
          %s838 = sld [smem:[#allocation5 + $0x6]]
          %v839 = vstv %s838
          %v840 = vmul.f32 %v839, %v836
          %v841 = vmul.f32 %v839, %v837
          %v844 = vcombine.low %v840, %v841
          %v846 = vadd.f32 %v808, %v844
          %s847 = sld [smem:[#allocation5 + $0x21]]
          %v848 = vstv %s847
          %v849 = vmul.f32 %v848, %v836
          %v850 = vmul.f32 %v848, %v837
          %v853 = vcombine.low %v849, %v850
          %v855 = vadd.f32 %v819, %v853
          %s856 = sld [smem:[#allocation5 + $0x3c]]
          %v857 = vstv %s856
          %v858 = vmul.f32 %v857, %v836
          %v859 = vmul.f32 %v857, %v837
          %v862 = vcombine.low %v858, %v859
          %v864 = vadd.f32 %v830, %v862
          %s865 = sld [smem:[#allocation5 + $0xf]]
          %v866 = vstv %s865
          %v867 = vmul.f32 %v866, %v836
          %v868 = vmul.f32 %v866, %v837
          %v871 = vcombine.low %v867, %v868
          %v872 = vrot.slane %v871, 5
          %v873 = vrot.slane %v872, 4
          %v875 = vadd.f32 %v846, %v873
          %s876 = sld [smem:[#allocation5 + $0x2a]]
          %v877 = vstv %s876
          %v878 = vmul.f32 %v877, %v836
          %v879 = vmul.f32 %v877, %v837
          %v882 = vcombine.low %v878, %v879
          %v883 = vrot.slane %v882, 5
          %v884 = vrot.slane %v883, 4
          %v886 = vadd.f32 %v855, %v884
          %s887 = sld [smem:[#allocation5 + $0x45]]
          %v888 = vstv %s887
          %v889 = vmul.f32 %v888, %v836
          %v890 = vmul.f32 %v888, %v837
          %v893 = vcombine.low %v889, %v890
          %v894 = vrot.slane %v893, 5
          %v895 = vrot.slane %v894, 4
          %v897 = vadd.f32 %v864, %v895
          %s898 = sld [smem:[#allocation5 + $0x18]]
          %v899 = vstv %s898
          %v900 = vmul.f32 %v899, %v836
          %v901 = vmul.f32 %v899, %v837
          %v904 = vcombine.low %v900, %v901
          %v905 = vrot.slane %v904, 6
          %v906 = vrot.slane %v905, 4
          %v908 = vadd.f32 %v875, %v906
          %s909 = sld [smem:[#allocation5 + $0x33]]
          %v910 = vstv %s909
          %v911 = vmul.f32 %v910, %v836
          %v912 = vmul.f32 %v910, %v837
          %v915 = vcombine.low %v911, %v912
          %v916 = vrot.slane %v915, 6
          %v917 = vrot.slane %v916, 4
          %v919 = vadd.f32 %v886, %v917
          %s920 = sld [smem:[#allocation5 + $0x4e]]
          %v921 = vstv %s920
          %v922 = vmul.f32 %v921, %v836
          %v923 = vmul.f32 %v921, %v837
          %v926 = vcombine.low %v922, %v923
          %v927 = vrot.slane %v926, 6
          %v928 = vrot.slane %v927, 4
          %v930 = vadd.f32 %v897, %v928
          %931 = vrot.lane.b32.xlu0 %v267, 95
          %v932 = vpop.permute.xlu0 %931
          %933 = vrot.lane.b32.xlu0 %v327, 95
          %v934 = vpop.permute.xlu0 %933
          %vm935 = vcmp.lt.s32.totalorder %v334, 95
          %v936 = vsel %vm935, %v932, %v934
          %v937 = vsel %vm935, %v934, %v932
          %s938 = sld [smem:[#allocation5 + $0x7]]
          %v939 = vstv %s938
          %v940 = vmul.f32 %v939, %v936
          %v941 = vmul.f32 %v939, %v937
          %v944 = vcombine.low %v940, %v941
          %v946 = vadd.f32 %v908, %v944
          %s947 = sld [smem:[#allocation5 + $0x22]]
          %v948 = vstv %s947
          %v949 = vmul.f32 %v948, %v936
          %v950 = vmul.f32 %v948, %v937
          %v953 = vcombine.low %v949, %v950
          %v955 = vadd.f32 %v919, %v953
          %s956 = sld [smem:[#allocation5 + $0x3d]]
          %v957 = vstv %s956
          %v958 = vmul.f32 %v957, %v936
          %v959 = vmul.f32 %v957, %v937
          %v962 = vcombine.low %v958, %v959
          %v964 = vadd.f32 %v930, %v962
          %s965 = sld [smem:[#allocation5 + $0x10]]
          %v966 = vstv %s965
          %v967 = vmul.f32 %v966, %v936
          %v968 = vmul.f32 %v966, %v937
          %v971 = vcombine.low %v967, %v968
          %v972 = vrot.slane %v971, 5
          %v973 = vrot.slane %v972, 4
          %v975 = vadd.f32 %v946, %v973
          %s976 = sld [smem:[#allocation5 + $0x2b]]
          %v977 = vstv %s976
          %v978 = vmul.f32 %v977, %v936
          %v979 = vmul.f32 %v977, %v937
          %v982 = vcombine.low %v978, %v979
          %v983 = vrot.slane %v982, 5
          %v984 = vrot.slane %v983, 4
          %v986 = vadd.f32 %v955, %v984
          %s987 = sld [smem:[#allocation5 + $0x46]]
          %v988 = vstv %s987
          %v989 = vmul.f32 %v988, %v936
          %v990 = vmul.f32 %v988, %v937
          %v993 = vcombine.low %v989, %v990
          %v994 = vrot.slane %v993, 5
          %v995 = vrot.slane %v994, 4
          %v997 = vadd.f32 %v964, %v995
          %s998 = sld [smem:[#allocation5 + $0x19]]
          %v999 = vstv %s998
          %v1000 = vmul.f32 %v999, %v936
          %v1001 = vmul.f32 %v999, %v937
          %v1004 = vcombine.low %v1000, %v1001
          %v1005 = vrot.slane %v1004, 6
          %v1006 = vrot.slane %v1005, 4
          %v1008 = vadd.f32 %v975, %v1006
          %s1009 = sld [smem:[#allocation5 + $0x34]]
          %v1010 = vstv %s1009
          %v1011 = vmul.f32 %v1010, %v936
          %v1012 = vmul.f32 %v1010, %v937
          %v1015 = vcombine.low %v1011, %v1012
          %v1016 = vrot.slane %v1015, 6
          %v1017 = vrot.slane %v1016, 4
          %v1019 = vadd.f32 %v986, %v1017
          %s1020 = sld [smem:[#allocation5 + $0x4f]]
          %v1021 = vstv %s1020
          %v1022 = vmul.f32 %v1021, %v936
          %v1023 = vmul.f32 %v1021, %v937
          %v1026 = vcombine.low %v1022, %v1023
          %v1027 = vrot.slane %v1026, 6
          %v1028 = vrot.slane %v1027, 4
          %v1030 = vadd.f32 %v997, %v1028
          %1031 = vrot.lane.b32.xlu0 %v267, 94
          %v1032 = vpop.permute.xlu0 %1031
          %1033 = vrot.lane.b32.xlu0 %v327, 94
          %v1034 = vpop.permute.xlu0 %1033
          %vm1035 = vcmp.lt.s32.totalorder %v334, 94
          %v1036 = vsel %vm1035, %v1032, %v1034
          %v1037 = vsel %vm1035, %v1034, %v1032
          %s1038 = sld [smem:[#allocation5 + $0x8]]
          %v1039 = vstv %s1038
          %v1040 = vmul.f32 %v1039, %v1036
          %v1041 = vmul.f32 %v1039, %v1037
          %v1044 = vcombine.low %v1040, %v1041
          %v1046 = vadd.f32 %v1008, %v1044
          %s1047 = sld [smem:[#allocation5 + $0x23]]
          %v1048 = vstv %s1047
          %v1049 = vmul.f32 %v1048, %v1036
          %v1050 = vmul.f32 %v1048, %v1037
          %v1053 = vcombine.low %v1049, %v1050
          %v1055 = vadd.f32 %v1019, %v1053
          %s1056 = sld [smem:[#allocation5 + $0x3e]]
          %v1057 = vstv %s1056
          %v1058 = vmul.f32 %v1057, %v1036
          %v1059 = vmul.f32 %v1057, %v1037
          %v1062 = vcombine.low %v1058, %v1059
          %v1064 = vadd.f32 %v1030, %v1062
          %s1065 = sld [smem:[#allocation5 + $0x11]]
          %v1066 = vstv %s1065
          %v1067 = vmul.f32 %v1066, %v1036
          %v1068 = vmul.f32 %v1066, %v1037
          %v1071 = vcombine.low %v1067, %v1068
          %v1072 = vrot.slane %v1071, 5
          %v1073 = vrot.slane %v1072, 4
          %v1075 = vadd.f32 %v1046, %v1073
          %s1076 = sld [smem:[#allocation5 + $0x2c]]
          %v1077 = vstv %s1076
          %v1078 = vmul.f32 %v1077, %v1036
          %v1079 = vmul.f32 %v1077, %v1037
          %v1082 = vcombine.low %v1078, %v1079
          %v1083 = vrot.slane %v1082, 5
          %v1084 = vrot.slane %v1083, 4
          %v1086 = vadd.f32 %v1055, %v1084
          %s1087 = sld [smem:[#allocation5 + $0x47]]
          %v1088 = vstv %s1087
          %v1089 = vmul.f32 %v1088, %v1036
          %v1090 = vmul.f32 %v1088, %v1037
          %v1093 = vcombine.low %v1089, %v1090
          %v1094 = vrot.slane %v1093, 5
          %v1095 = vrot.slane %v1094, 4
          %v1097 = vadd.f32 %v1064, %v1095
          %s1098 = sld [smem:[#allocation5 + $0x1a]]
          %v1099 = vstv %s1098
          %v1100 = vmul.f32 %v1099, %v1036
          %v1101 = vmul.f32 %v1099, %v1037
          %v1104 = vcombine.low %v1100, %v1101
          %v1105 = vrot.slane %v1104, 6
          %v1106 = vrot.slane %v1105, 4
          %v1108 = vadd.f32 %v1075, %v1106
          %s1109 = sld [smem:[#allocation5 + $0x35]]
          %v1110 = vstv %s1109
          %v1111 = vmul.f32 %v1110, %v1036
          %v1112 = vmul.f32 %v1110, %v1037
          %v1115 = vcombine.low %v1111, %v1112
          %v1116 = vrot.slane %v1115, 6
          %v1117 = vrot.slane %v1116, 4
          %v1119 = vadd.f32 %v1086, %v1117
          %s1120 = sld [smem:[#allocation5 + $0x50]]
          %v1121 = vstv %s1120
          %v1122 = vmul.f32 %v1121, %v1036
          %v1123 = vmul.f32 %v1121, %v1037
          %v1126 = vcombine.low %v1122, %v1123
          %v1127 = vrot.slane %v1126, 6
          %v1128 = vrot.slane %v1127, 4
          %v1130 = vadd.f32 %v1097, %v1128
          %v1132 = vlaneseq
          %v1133 = vshrl.u32 %v1132, 7
          %v1134 = vsub.s32 0, %v1133
          %v1135 = vrot.slane %v1108, %v1134
          %v1136 = vlaneseq
          %v1137 = vshrl.u32 %v1136, 7
          %v1138 = vsub.s32 4, %v1137
          %v1139 = vrot.slane %v1108, %v1138
          %v1143 = vlaneseq
          %v1144 = vshrl.u32 %v1143, 7
          %v1145 = vsub.s32 0, %v1144
          %v1146 = vrot.slane %v1119, %v1145
          %v1147 = vlaneseq
          %v1148 = vshrl.u32 %v1147, 7
          %v1149 = vsub.s32 4, %v1148
          %v1150 = vrot.slane %v1119, %v1149
          %v1154 = vlaneseq
          %v1155 = vshrl.u32 %v1154, 7
          %v1156 = vsub.s32 0, %v1155
          %v1157 = vrot.slane %v1130, %v1156
          %v1158 = vlaneseq
          %v1159 = vshrl.u32 %v1158, 7
          %v1160 = vsub.s32 4, %v1159
          %v1161 = vrot.slane %v1130, %v1160
          %vm1164 = vcmask 1040384
          %v1165 = vsel %vm1164, %v1135, %v1146
          %v1166 = vsel %vm1164, %v1139, %v1150
          %vm1167 = vcmask 1041408
          %v1168 = vsel %vm1167, %v1165, %v1157
          %v1169 = vsel %vm1167, %v1166, %v1161
          %v1172 = vcombine.low %v1168, %v1169
          %s1174 = smul.u32 %s22, 2
          %s1175 = smul.addr %s1174, 4
          %s1176 = scalar_lea.vmem [#allocation2], %s1175
          %1177 = vst [vmem:[%s1176] sm:$0x77] %v1172
          %v1179 = vlaneseq
          %v1180 = vshrl.u32 %v1179, 7
          %v1181 = vsub.s32 0, %v1180
          %v1182 = vrot.slane %v268, %v1181
          %v1183 = vlaneseq
          %v1184 = vshrl.u32 %v1183, 7
          %v1185 = vsub.s32 1, %v1184
          %v1186 = vrot.slane %v268, %v1185
          %v1189 = vmul.f32 %v1168, %v1182
          %v1190 = vmul.f32 %v1169, %v1186
          %v1191 = vld [vmem:[#allocation3] sm:$0x77]
          %v1194 = vcombine.low %v1189, %v1190
          %v1196 = vadd.f32 %v1191, %v1194
          %1197 = vst [vmem:[#allocation3] sm:$0x77] %v1196
          %s1198 = scalar_lea.vmem [#allocation3], 8
          %v1199 = vld [vmem:[%s1198] sm:$0x77]
          %v1200 = vmul.f32 %v1189, %v1168
          %v1201 = vmul.f32 %v1190, %v1169
          %v1204 = vcombine.low %v1200, %v1201
          %v1206 = vadd.f32 %v1199, %v1204
          %1207 = vst [vmem:[%s1198] sm:$0x77] %v1206
        $region52: #{conv_bn_bias.1} parent=35 // pred_fallthru
          _
        %p1208 = scmp.eq.s32.totalorder %s21, 1
        %p1209 = pnand %p1208, %p257
        %p1210 = pneg %p1209
        // Predicated region
        $region53: #{conv_bn_bias.1} parent=35 // pred_check
          _
        $region54: #{conv_bn_bias.1} parent=35 // pred_check_branch
          %1212 = sbr.rel (%p1209) target = $region56
        $region55: #{conv_bn_bias.1} parent=35 // pred_region
          %v1213 = vld [vmem:[#allocation3] ss:$4 sm:$0x3]
          %v1215 = vlaneseq
          %v1216 = vshrl.u32 %v1215, 7
          %v1217 = vsub.s32 0, %v1216
          %v1218 = vrot.slane %v1213, %v1217
          %v1219 = vlaneseq
          %v1220 = vshrl.u32 %v1219, 7
          %v1221 = vsub.s32 1, %v1220
          %v1222 = vrot.slane %v1213, %v1221
          %vm1225 = vcmask 1040384
          %v1226 = vsel %vm1225, %v1218, 0.0
          %v1227 = vsel %vm1225, %v1222, 0.0
          %v1228 = vadd.f32 %v1226, %v1227
          %1229 = vadd.xlane.f32.xlu0 %v1228
          %v1230 = vpop.xlane.xlu0 %1229
          %v1231 = vrot.slane %v1230, 4
          %v1232 = vadd.f32 %v1230, %v1231
          %v1233 = vrot.slane %v1232, 2
          %v1234 = vadd.f32 %v1232, %v1233
          %v1235 = vrot.slane %v1234, 1
          %v1236 = vadd.f32 %v1234, %v1235
          %s1237 = vtos %v1236
          %s1238 = scalar_lea.vmem [#allocation3], 8
          %v1239 = vld [vmem:[%s1238] ss:$4 sm:$0x3]
          %v1241 = vlaneseq
          %v1242 = vshrl.u32 %v1241, 7
          %v1243 = vsub.s32 0, %v1242
          %v1244 = vrot.slane %v1239, %v1243
          %v1245 = vlaneseq
          %v1246 = vshrl.u32 %v1245, 7
          %v1247 = vsub.s32 1, %v1246
          %v1248 = vrot.slane %v1239, %v1247
          %v1251 = vsel %vm1225, %v1244, 0.0
          %v1252 = vsel %vm1225, %v1248, 0.0
          %v1253 = vadd.f32 %v1251, %v1252
          %1254 = vadd.xlane.f32.xlu0 %v1253
          %v1255 = vpop.xlane.xlu0 %1254
          %v1256 = vrot.slane %v1255, 4
          %v1257 = vadd.f32 %v1255, %v1256
          %v1258 = vrot.slane %v1257, 2
          %v1259 = vadd.f32 %v1257, %v1258
          %v1260 = vrot.slane %v1259, 1
          %v1261 = vadd.f32 %v1259, %v1260
          %s1262 = vtos %v1261
          %v1263 = vrcp.pop 392.0
          %s1264 = vtos %v1263
          %s1265 = smul.f32 %s1237, %s1264
          %v1266 = vrcp.pop 392.0
          %s1267 = vtos %v1266
          %s1268 = smul.f32 %s1262, %s1267
          %s1269 = smul.f32 %s1265, %s1265
          %s1270 = ssub.f32 %s1268, %s1269
          %s1271 = smax.f32 %s1270, 0.0
          %s1272 = sld [smem:[#allocation7]]
          %s1273 = sadd.f32 %s1271, 1e-05
          %v1274 = vstv %s1273
          %v1275 = vrsqrt.pop %v1274
          %s1276 = vtos %v1275
          %s1277 = smul.f32 %s1272, %s1276
          %s1278 = scalar_lea.smem [#allocation4], 0
          %1279 = sst [smem:[%s1278]] %s1277
          %s1280 = sld [smem:[#allocation7 + $0x3]]
          %s1281 = smul.f32 %s1265, %s1277
          %s1282 = ssub.f32 %s1280, %s1281
          %s1283 = scalar_lea.smem [#allocation4], 3
          %1284 = sst [smem:[%s1283]] %s1282
          %s1285 = scalar_lea.vmem [#allocation3], 1
          %v1286 = vld [vmem:[%s1285] ss:$4 sm:$0x3]
          %v1288 = vlaneseq
          %v1289 = vshrl.u32 %v1288, 7
          %v1290 = vsub.s32 0, %v1289
          %v1291 = vrot.slane %v1286, %v1290
          %v1292 = vlaneseq
          %v1293 = vshrl.u32 %v1292, 7
          %v1294 = vsub.s32 1, %v1293
          %v1295 = vrot.slane %v1286, %v1294
          %v1298 = vsel %vm1225, %v1291, 0.0
          %v1299 = vsel %vm1225, %v1295, 0.0
          %v1300 = vadd.f32 %v1298, %v1299
          %1301 = vadd.xlane.f32.xlu0 %v1300
          %v1302 = vpop.xlane.xlu0 %1301
          %v1303 = vrot.slane %v1302, 4
          %v1304 = vadd.f32 %v1302, %v1303
          %v1305 = vrot.slane %v1304, 2
          %v1306 = vadd.f32 %v1304, %v1305
          %v1307 = vrot.slane %v1306, 1
          %v1308 = vadd.f32 %v1306, %v1307
          %s1309 = vtos %v1308
          %s1310 = scalar_lea.vmem %s1238, 1 [#allocation3]
          %v1311 = vld [vmem:[%s1310] ss:$4 sm:$0x3]
          %v1313 = vlaneseq
          %v1314 = vshrl.u32 %v1313, 7
          %v1315 = vsub.s32 0, %v1314
          %v1316 = vrot.slane %v1311, %v1315
          %v1317 = vlaneseq
          %v1318 = vshrl.u32 %v1317, 7
          %v1319 = vsub.s32 1, %v1318
          %v1320 = vrot.slane %v1311, %v1319
          %v1323 = vsel %vm1225, %v1316, 0.0
          %v1324 = vsel %vm1225, %v1320, 0.0
          %v1325 = vadd.f32 %v1323, %v1324
          %1326 = vadd.xlane.f32.xlu0 %v1325
          %v1327 = vpop.xlane.xlu0 %1326
          %v1328 = vrot.slane %v1327, 4
          %v1329 = vadd.f32 %v1327, %v1328
          %v1330 = vrot.slane %v1329, 2
          %v1331 = vadd.f32 %v1329, %v1330
          %v1332 = vrot.slane %v1331, 1
          %v1333 = vadd.f32 %v1331, %v1332
          %s1334 = vtos %v1333
          %v1335 = vrcp.pop 392.0
          %s1336 = vtos %v1335
          %s1337 = smul.f32 %s1309, %s1336
          %v1338 = vrcp.pop 392.0
          %s1339 = vtos %v1338
          %s1340 = smul.f32 %s1334, %s1339
          %s1341 = smul.f32 %s1337, %s1337
          %s1342 = ssub.f32 %s1340, %s1341
          %s1343 = smax.f32 %s1342, 0.0
          %s1344 = sld [smem:[#allocation7 + $0x1]]
          %s1345 = sadd.f32 %s1343, 1e-05
          %v1346 = vstv %s1345
          %v1347 = vrsqrt.pop %v1346
          %s1348 = vtos %v1347
          %s1349 = smul.f32 %s1344, %s1348
          %s1350 = scalar_lea.smem [#allocation4], 1
          %1351 = sst [smem:[%s1350]] %s1349
          %s1352 = sld [smem:[#allocation7 + $0x4]]
          %s1353 = smul.f32 %s1337, %s1349
          %s1354 = ssub.f32 %s1352, %s1353
          %s1355 = scalar_lea.smem [#allocation4], 4
          %1356 = sst [smem:[%s1355]] %s1354
          %s1357 = scalar_lea.vmem [#allocation3], 2
          %v1358 = vld [vmem:[%s1357] ss:$4 sm:$0x3]
          %v1360 = vlaneseq
          %v1361 = vshrl.u32 %v1360, 7
          %v1362 = vsub.s32 0, %v1361
          %v1363 = vrot.slane %v1358, %v1362
          %v1364 = vlaneseq
          %v1365 = vshrl.u32 %v1364, 7
          %v1366 = vsub.s32 1, %v1365
          %v1367 = vrot.slane %v1358, %v1366
          %v1370 = vsel %vm1225, %v1363, 0.0
          %v1371 = vsel %vm1225, %v1367, 0.0
          %v1372 = vadd.f32 %v1370, %v1371
          %1373 = vadd.xlane.f32.xlu0 %v1372
          %v1374 = vpop.xlane.xlu0 %1373
          %v1375 = vrot.slane %v1374, 4
          %v1376 = vadd.f32 %v1374, %v1375
          %v1377 = vrot.slane %v1376, 2
          %v1378 = vadd.f32 %v1376, %v1377
          %v1379 = vrot.slane %v1378, 1
          %v1380 = vadd.f32 %v1378, %v1379
          %s1381 = vtos %v1380
          %s1382 = scalar_lea.vmem %s1238, 2 [#allocation3]
          %v1383 = vld [vmem:[%s1382] ss:$4 sm:$0x3]
          %v1385 = vlaneseq
          %v1386 = vshrl.u32 %v1385, 7
          %v1387 = vsub.s32 0, %v1386
          %v1388 = vrot.slane %v1383, %v1387
          %v1389 = vlaneseq
          %v1390 = vshrl.u32 %v1389, 7
          %v1391 = vsub.s32 1, %v1390
          %v1392 = vrot.slane %v1383, %v1391
          %v1395 = vsel %vm1225, %v1388, 0.0
          %v1396 = vsel %vm1225, %v1392, 0.0
          %v1397 = vadd.f32 %v1395, %v1396
          %1398 = vadd.xlane.f32.xlu0 %v1397
          %v1399 = vpop.xlane.xlu0 %1398
          %v1400 = vrot.slane %v1399, 4
          %v1401 = vadd.f32 %v1399, %v1400
          %v1402 = vrot.slane %v1401, 2
          %v1403 = vadd.f32 %v1401, %v1402
          %v1404 = vrot.slane %v1403, 1
          %v1405 = vadd.f32 %v1403, %v1404
          %s1406 = vtos %v1405
          %v1407 = vrcp.pop 392.0
          %s1408 = vtos %v1407
          %s1409 = smul.f32 %s1381, %s1408
          %v1410 = vrcp.pop 392.0
          %s1411 = vtos %v1410
          %s1412 = smul.f32 %s1406, %s1411
          %s1413 = smul.f32 %s1409, %s1409
          %s1414 = ssub.f32 %s1412, %s1413
          %s1415 = smax.f32 %s1414, 0.0
          %s1416 = sld [smem:[#allocation7 + $0x2]]
          %s1417 = sadd.f32 %s1415, 1e-05
          %v1418 = vstv %s1417
          %v1419 = vrsqrt.pop %v1418
          %s1420 = vtos %v1419
          %s1421 = smul.f32 %s1416, %s1420
          %s1422 = scalar_lea.smem [#allocation4], 2
          %1423 = sst [smem:[%s1422]] %s1421
          %s1424 = sld [smem:[#allocation7 + $0x5]]
          %s1425 = smul.f32 %s1409, %s1421
          %s1426 = ssub.f32 %s1424, %s1425
          %s1427 = scalar_lea.smem [#allocation4], 5
          %1428 = sst [smem:[%s1427]] %s1426
        $region56: #{conv_bn_bias.1} parent=35 // pred_fallthru
          _
        // Predicated region
        $region57: #{conv_bn_bias.1} parent=35 // pred_check
          %p1429 = pneg %p1208
        $region58: #{conv_bn_bias.1} parent=35 // pred_check_branch
          %1431 = sbr.rel (%p1429) target = $region60
        $region59: #{conv_bn_bias.1} parent=35 // pred_region
          %s1432 = smul.u32 %s22, 2
          %s1433 = smul.addr %s1432, 4
          %s1434 = scalar_lea.vmem [#allocation2], %s1433
          %v1435 = vld [vmem:[%s1434] sm:$0x77]
          %s1436 = sld [smem:[#allocation4]]
          %v1437 = vstv %s1436
          %v1438 = vmul.f32 %v1435, %v1437
          %s1439 = sld [smem:[#allocation4 + $0x3]]
          %v1440 = vstv %s1439
          %v1441 = vadd.f32 %v1438, %v1440
          %v1444 = vunpack.c.l.s4 1966171168
          %v1445 = vunpack.c.0.s8 %v1444
          %v1446 = vlaneseq
          %v1447 = vshrl.u32 %v1446, 7
          %v1448 = vsub.s32 %v1445, %v1447
          %v1449 = vrot.slane %v1441, %v1448
          %v1451 = vunpack.c.l.s4 1966171168
          %v1452 = vunpack.c.0.s8 %v1451
          %v1453 = vlaneseq
          %v1454 = vshrl.u32 %v1453, 7
          %v1455 = vsub.s32 %v1452, %v1454
          %v1456 = vrot.slane %v1449, %v1455
          %v1458 = vlaneseq
          %vm1459 = vcmp.ge.s32.totalorder %v1458, 0
          %vm1460 = vcmp.lt.s32.totalorder %v1458, 256
          %vm1461 = vmand %vm1459, %vm1460
          %1462 = vst.msk [vmem:[%s254] ss:$4 sm:$0x3] %vm1461, %v1456
          %s1463 = sld [smem:[#allocation4 + $0x1]]
          %v1464 = vstv %s1463
          %v1465 = vmul.f32 %v1435, %v1464
          %s1466 = sld [smem:[#allocation4 + $0x4]]
          %v1467 = vstv %s1466
          %v1468 = vadd.f32 %v1465, %v1467
          %v1471 = vunpack.c.l.s4 1966171168
          %v1472 = vunpack.c.0.s8 %v1471
          %v1473 = vlaneseq
          %v1474 = vshrl.u32 %v1473, 7
          %v1475 = vsub.s32 %v1472, %v1474
          %v1476 = vrot.slane %v1468, %v1475
          %v1477 = vcombine.high %v1476, %v1476
          %v1479 = vunpack.c.l.s4 1966171168
          %v1480 = vunpack.c.0.s8 %v1479
          %v1481 = vlaneseq
          %v1482 = vshrl.u32 %v1481, 7
          %v1483 = vsub.s32 %v1480, %v1482
          %v1484 = vrot.slane %v1477, %v1483
          %s1486 = scalar_lea.vmem %s254, 1
          %1487 = vst.msk [vmem:[%s1486] ss:$4 sm:$0x3] %vm1461, %v1484
          %s1488 = sld [smem:[#allocation4 + $0x2]]
          %v1489 = vstv %s1488
          %v1490 = vmul.f32 %v1435, %v1489
          %s1491 = sld [smem:[#allocation4 + $0x5]]
          %v1492 = vstv %s1491
          %v1493 = vadd.f32 %v1490, %v1492
          %v1496 = vunpack.c.l.s4 1966171168
          %v1497 = vunpack.c.0.s8 %v1496
          %v1498 = vlaneseq
          %v1499 = vshrl.u32 %v1498, 7
          %v1500 = vsub.s32 %v1497, %v1499
          %v1501 = vrot.slane %v1493, %v1500
          %v1503 = vunpack.c.l.s4 1966171168
          %v1504 = vunpack.c.0.s8 %v1503
          %v1505 = vlaneseq
          %v1506 = vshrl.u32 %v1505, 7
          %v1507 = vsub.s32 %v1504, %v1506
          %v1508 = vrot.slane %v1501, %v1507
          %v1509 = vcombine.high %v1508, %v1508
          %s1511 = scalar_lea.vmem %s254, 2
          %1512 = vst.msk [vmem:[%s1511] ss:$4 sm:$0x3] %vm1461, %v1509
        $region60: #{conv_bn_bias.1} parent=35 // pred_fallthru
          _
        %s1513 = smul.u32 %s21, %s22
        %p1514 = scmp.lt.s32.totalorder %s1513, 1
        %s1515 = scalar_select %p1514, %s1513, 1
        %s1516 = smul.addr %s1515, 2
        %s1517 = smul.addr %s1516, 4
        %s1518 = scalar_lea.vmem %s4, %s1517
        // Predicated region
        $region61: #{conv_bn_bias.1} parent=35 // pred_check
          %p1519 = pneg %p142
        $region62: #{conv_bn_bias.1} parent=35 // pred_check_branch
          %1521 = sbr.rel (%p1519) target = $region64
        $region63: #{conv_bn_bias.1} parent=35 // pred_region
          %s1522 = smul.u32 %s21, %s22
        $region64: #{conv_bn_bias.1} parent=35 // pred_fallthru
          _
      $region36: #{conv_bn_bias.1} parent=5 // pred_fallthru
        _
      %p1523 = scmp.le.s32.totalorder 2, %s12
      // Predicated region
      $region65: #{conv_bn_bias.1} parent=5 // pred_check
        %p1524 = pneg %p1523
      $region66: #{conv_bn_bias.1} parent=5 // pred_check_branch
        %1526 = sbr.rel (%p1524) target = $region68
      $region67: #{conv_bn_bias.1} parent=5 // pred_region
        %s1527 = ssub.s32 %s12, 2
        // Predicated region
        $region69: #{conv_bn_bias.1} parent=67 // pred_check
          %p1528 = pneg %p148
        $region70: #{conv_bn_bias.1} parent=67 // pred_check_branch
          %1530 = sbr.rel (%p1528) target = $region72
        $region71: #{conv_bn_bias.1} parent=67 // pred_region
          %s1531 = smul.u32 %s23, %s24
          %p1532 = scmp.lt.s32.totalorder %s1531, 1
          %s1533 = scalar_select %p1532, %s1531, 1
          %s1534 = smul.addr %s1533, 2
          %s1535 = smul.addr %s1534, 4
          %s1536 = scalar_lea.vmem %s4, %s1535
        $region72: #{conv_bn_bias.1} parent=67 // pred_fallthru
          _
      $region68: #{conv_bn_bias.1} parent=5 // pred_fallthru
        _
    $region6: #{conv_bn_bias.1} parent=1 // loop_footer
      %s16 = sadd.s32 1, %s12
    $region7: #{conv_bn_bias.1} parent=1 // loop_footer_branch
      %11 = sbr.rel target = $region3
    $region8: #{conv_bn_bias.1} parent=1 // loop_exit
      _
    %1537 = vsyncpa [#allocation6], 1
    %s1538 = scalar_lea.sflag [#allocation6], 1
    %1539 = vsyncpa %s1538, 1
    %1540 = vsyncpa [#allocation8], 1

</llo_original>
